<compile_context>
chip_gen: v7x
topology: tpu7x:2x2x1
jax: 0.10.0
libtpu: 0.0.40
codegen_flags: <defaults>
</compile_context>

<pallas_src>
import functools

import jax
import jax.numpy as jnp
from jax.experimental import pallas as pl
from jax.experimental.pallas import tpu as pltpu


def _round_up(n, m):
    return ((n + m - 1) // m) * m


def _pick_vmem_limit():
    """Scoped-VMEM limit from the chip's physical VMEM, with a conservative fallback."""
    cap = None
    try:
        cap = getattr(pltpu.get_tpu_info(), "vmem_capacity_bytes", None)
    except Exception:
        cap = None
    if not cap:
        return 48 * 1024 * 1024
    # v7x (64 MiB) -> 48 MiB; v5e/v6e (128 MiB) -> 96 MiB. Headroom for compiler scratch.
    return min(int(cap * 3 // 4), 100 * 1024 * 1024)


def _layer_norm(x, gamma, beta, d_real, eps=1e-5):
    """LayerNorm over a zero-padded last axis.

    x: (M, Dp) with columns [d_real:] guaranteed zero.
    gamma/beta: (1, Dp), zero in padded columns so padded output columns stay zero.
    Biased variance via E[x^2] - mean^2 (padded columns contribute 0 -> no mask needed).
    Matches nn.LayerNorm (eps=1e-5) over the first d_real columns.
    """
    inv_d = jnp.float32(1.0 / d_real)
    mean = jnp.sum(x, axis=-1, keepdims=True) * inv_d
    ex2 = jnp.sum(x * x, axis=-1, keepdims=True) * inv_d
    var = jnp.maximum(ex2 - mean * mean, 0.0)
    inv = jax.lax.rsqrt(var + eps)
    return (x - mean) * inv * gamma + beta


def funicross_kernel(
    q_ref, k_ref, v_ref,
    wk_ref, bk_ref, wv_ref, bv_ref, wo_ref, bo_ref,
    ln1_g_ref, ln1_b_ref,
    w1_ref, b1_ref, w2_ref, b2_ref,
    ln2_g_ref, ln2_b_ref,
    out_ref,
    *, d1, sk,
):
    bt, tq, dp1 = q_ref.shape
    _, skp, dp2 = k_ref.shape
    m_rows = bt * tq

    q = q_ref[...]                                 # (bt, tq, dp1) f32 (residual/LN path)
    k2 = k_ref[...].reshape(bt * skp, dp2)         # bf16
    v2 = v_ref[...].reshape(bt * skp, dp2)         # bf16

    # --- CrossAttention: K/V projections (flattened over the tile), kept in bf16 ---
    # (1/sqrt(dim1) score scale is pre-folded into wk/bk at param-prep time.)
    k_proj = (jnp.dot(k2, wk_ref[...], preferred_element_type=jnp.float32)
              + bk_ref[...]).astype(jnp.bfloat16).reshape(bt, skp, dp1)
    v_proj = (jnp.dot(v2, wv_ref[...], preferred_element_type=jnp.float32)
              + bv_ref[...]).astype(jnp.bfloat16).reshape(bt, skp, dp1)

    # Scores: contract last dims directly (batched dot_general), no transpose.
    scores = jnp.einsum("bqd,bkd->bqk", q.astype(jnp.bfloat16), k_proj,
                        preferred_element_type=jnp.float32)      # (bt, tq, skp) f32
    if skp != sk:  # mask padded keys out of the softmax (exp underflows to exactly 0)
        kmask = jax.lax.broadcasted_iota(jnp.int32, scores.shape, 2) < sk
        scores = jnp.where(kmask, scores, -1e30)

    m = jnp.max(scores, axis=-1, keepdims=True)
    e = jnp.exp(scores - m)
    probs = (e * pl.reciprocal(jnp.sum(e, axis=-1, keepdims=True), approx=True)
             ).astype(jnp.bfloat16)

    context = jnp.einsum("bqk,bkd->bqd", probs, v_proj,
                         preferred_element_type=jnp.float32)     # (bt, tq, dp1)
    ctx2 = context.reshape(m_rows, dp1).astype(jnp.bfloat16)
    attn_out = jnp.dot(ctx2, wo_ref[...],
                       preferred_element_type=jnp.float32) + bo_ref[...]

    # --- residual + LayerNorm 1 ---
    q2d = q.reshape(m_rows, dp1)
    q1 = _layer_norm(q2d + attn_out, ln1_g_ref[...], ln1_b_ref[...], d1)

    # --- FeedForward (condition=None; dropout = identity / eval mode) ---
    h = jnp.maximum(
        jnp.dot(q1.astype(jnp.bfloat16), w1_ref[...],
                preferred_element_type=jnp.float32) + b1_ref[...],
        0.0).astype(jnp.bfloat16)
    ff_out = jnp.dot(h, w2_ref[...],
                     preferred_element_type=jnp.float32) + b2_ref[...]

    # --- residual + LayerNorm 2 ---
    q2 = _layer_norm(q1 + ff_out, ln2_g_ref[...], ln2_b_ref[...], d1)

    out_ref[...] = q2.reshape(bt, tq, dp1).astype(out_ref.dtype)


def prepare_params(params, d1, d2, ff_dim, w_dtype=jnp.bfloat16):
    """Pad weights to lane-dense (128-multiple) dims, fold the 1/sqrt(d1) score scale
    into wk/bk, and cast matmul weights to bf16 (biases / LN params stay f32)."""
    dp1 = max(_round_up(d1, 128), 128)
    dp2 = max(_round_up(d2, 128), 128)
    ffp = max(_round_up(ff_dim, 128), 128)
    scale = 1.0 / (d1 ** 0.5)

    def padw(w, r, c):
        return jnp.pad(w, ((0, r - w.shape[0]), (0, c - w.shape[1])))

    def padb(b, c):
        return jnp.pad(b, ((0, 0), (0, c - b.shape[1])))

    prepped = {
        "wk": padw(params["wk"] * scale, dp2, dp1).astype(w_dtype),
        "bk": padb(params["bk"] * scale, dp1).astype(jnp.float32),
        "wv": padw(params["wv"], dp2, dp1).astype(w_dtype),
        "bv": padb(params["bv"], dp1).astype(jnp.float32),
        "wo": padw(params["wo"], dp1, dp1).astype(w_dtype),
        "bo": padb(params["bo"], dp1).astype(jnp.float32),
        "ln1_g": padb(params["ln1_g"], dp1).astype(jnp.float32),
        "ln1_b": padb(params["ln1_b"], dp1).astype(jnp.float32),
        "w1": padw(params["w1"], dp1, ffp).astype(w_dtype),
        "b1": padb(params["b1"], ffp).astype(jnp.float32),
        "w2": padw(params["w2"], ffp, dp1).astype(w_dtype),
        "b2": padb(params["b2"], dp1).astype(jnp.float32),
        "ln2_g": padb(params["ln2_g"], dp1).astype(jnp.float32),
        "ln2_b": padb(params["ln2_b"], dp1).astype(jnp.float32),
    }
    return prepped, (dp1, dp2, ffp)


def funicross(Q, K, V, params, *, target_rows=512):
    B, Sq, d1 = Q.shape
    _, Sk, d2 = K.shape
    ff_dim = params["w1"].shape[1]

    prepped, (dp1, dp2, ffp) = prepare_params(params, d1, d2, ff_dim)

    # Sequence/key padding: queries to sublane multiples, keys to lane multiples (128)
    # so scores/probs are lane-dense and the probs@v contraction K is unragged.
    sqp = max(_round_up(Sq, 8), 8)
    skp = max(_round_up(Sk, 128), 128)

    # Query tile: whole (padded) query axis if small, 256-row tiles otherwise.
    if sqp <= target_rows:
        tq = sqp
    else:
        tq = 256
        sqp = _round_up(sqp, tq)

    # Batch tile: fill the MXU M dimension (~256-512 rows) without blowing VMEM.
    Bt = max(1, min(B, target_rows // tq))
    bp = _round_up(B, Bt)

    Qp = jnp.pad(Q, ((0, bp - B), (0, sqp - Sq), (0, dp1 - d1))).astype(jnp.float32)
    Kp = jnp.pad(K, ((0, bp - B), (0, skp - Sk), (0, dp2 - d2))).astype(jnp.bfloat16)
    Vp = jnp.pad(V, ((0, bp - B), (0, skp - Sk), (0, dp2 - d2))).astype(jnp.bfloat16)

    def wspec(shape):
        # Constant weight/bias block: never re-fetched, so single-buffer it.
        return pl.BlockSpec(shape, lambda b, q: (0,) * len(shape),
                            pipeline_mode=pl.Buffered(1))

    kernel = functools.partial(funicross_kernel, d1=d1, sk=Sk)

    # Advisory cost estimate for the surrounding XLA schedule.
    flops = 2 * B * (Sk * d2 * d1 * 2      # K/V projections
                     + Sq * Sk * d1 * 2    # scores + context
                     + Sq * d1 * d1        # out projection
                     + Sq * d1 * ff_dim * 2)  # FFN
    weight_bytes = sum(int(w.size) * w.dtype.itemsize for w in prepped.values())
    bytes_accessed = (Qp.size * 4 + Kp.size * 2 + Vp.size * 2
                      + bp * sqp * dp1 * 4 + weight_bytes)
    cost = pl.CostEstimate(flops=int(flops),
                           transcendentals=int(B * Sq * Sk),
                           bytes_accessed=int(bytes_accessed))

    out = pl.pallas_call(
        kernel,
        out_shape=jax.ShapeDtypeStruct((bp, sqp, dp1), jnp.float32),
        grid_spec=pltpu.PrefetchScalarGridSpec(
            num_scalar_prefetch=0,
            grid=(bp // Bt, sqp // tq),
            in_specs=[
                pl.BlockSpec((Bt, tq, dp1), lambda b, q: (b, q, 0)),   # Q
                pl.BlockSpec((Bt, skp, dp2), lambda b, q: (b, 0, 0)),  # K (per-batch only)
                pl.BlockSpec((Bt, skp, dp2), lambda b, q: (b, 0, 0)),  # V (per-batch only)
                wspec((dp2, dp1)),  # wk (pre-scaled)
                wspec((1, dp1)),    # bk (pre-scaled)
                wspec((dp2, dp1)),  # wv
                wspec((1, dp1)),    # bv
                wspec((dp1, dp1)),  # wo
                wspec((1, dp1)),    # bo
                wspec((1, dp1)),    # ln1 gamma
                wspec((1, dp1)),    # ln1 beta
                wspec((dp1, ffp)),  # w1
                wspec((1, ffp)),    # b1
                wspec((ffp, dp1)),  # w2
                wspec((1, dp1)),    # b2
                wspec((1, dp1)),    # ln2 gamma
                wspec((1, dp1)),    # ln2 beta
            ],
            out_specs=pl.BlockSpec((Bt, tq, dp1), lambda b, q: (b, q, 0)),
        ),
        compiler_params=pltpu.CompilerParams(
            dimension_semantics=("parallel", "parallel"),
            vmem_limit_bytes=_pick_vmem_limit(),
        ),
        cost_estimate=cost,
    )(
        Qp, Kp, Vp,
        prepped["wk"], prepped["bk"], prepped["wv"], prepped["bv"],
        prepped["wo"], prepped["bo"],
        prepped["ln1_g"], prepped["ln1_b"],
        prepped["w1"], prepped["b1"], prepped["w2"], prepped["b2"],
        prepped["ln2_g"], prepped["ln2_b"],
    )
    return out[:B, :Sq, :d1]


def funicross_ref(Q, K, V, p):
    # Pure-JAX f32 reference (matches the PyTorch module forward, eval mode).
    d1 = Q.shape[-1]
    k_proj = K @ p["wk"] + p["bk"]
    v_proj = V @ p["wv"] + p["bv"]
    scores = jnp.einsum("bqd,bkd->bqk", Q, k_proj) / jnp.sqrt(jnp.float32(d1))
    probs = jax.nn.softmax(scores, axis=-1)
    ctx = jnp.einsum("bqk,bkd->bqd", probs, v_proj)
    attn = ctx @ p["wo"] + p["bo"]

    def ln(x, g, b, eps=1e-5):
        mu = jnp.mean(x, -1, keepdims=True)
        var = jnp.mean((x - mu) ** 2, -1, keepdims=True)
        return (x - mu) / jnp.sqrt(var + eps) * g + b

    q1 = ln(Q + attn, p["ln1_g"], p["ln1_b"])
    h = jnp.maximum(q1 @ p["w1"] + p["b1"], 0.0)
    ff = h @ p["w2"] + p["b2"]
    return ln(q1 + ff, p["ln2_g"], p["ln2_b"])


def make_params(key, dim1, dim2, ff_dim):
    # Deterministic synthetic init (PyTorch-Linear-style uniform ranges).
    ks = jax.random.split(key, 10)
    u = lambda k, shape, bound: jax.random.uniform(
        k, shape, jnp.float32, minval=-bound, maxval=bound)
    return {
        # weights stored as (in_features, out_features)
        "wk": u(ks[0], (dim2, dim1), 1.0 / dim2 ** 0.5),
        "bk": u(ks[1], (1, dim1), 1.0 / dim2 ** 0.5),
        "wv": u(ks[2], (dim2, dim1), 1.0 / dim2 ** 0.5),
        "bv": u(ks[3], (1, dim1), 1.0 / dim2 ** 0.5),
        "wo": u(ks[4], (dim1, dim1), 1.0 / dim1 ** 0.5),
        "bo": u(ks[5], (1, dim1), 1.0 / dim1 ** 0.5),
        "ln1_g": jnp.ones((1, dim1), jnp.float32),
        "ln1_b": jnp.zeros((1, dim1), jnp.float32),
        "w1": u(ks[6], (dim1, ff_dim), 1.0 / dim1 ** 0.5),
        "b1": u(ks[7], (1, ff_dim), 1.0 / dim1 ** 0.5),
        "w2": u(ks[8], (ff_dim, dim1), 1.0 / ff_dim ** 0.5),
        "b2": u(ks[9], (1, dim1), 1.0 / ff_dim ** 0.5),
        "ln2_g": jnp.ones((1, dim1), jnp.float32),
        "ln2_b": jnp.zeros((1, dim1), jnp.float32),
    }


if __name__ == "__main__":
    B, Sq, Sk = 2, 8, 8
    dim1, dim2, ff_dim = 32, 16, 128

    key = jax.random.PRNGKey(0)
    kq, kk, kv, kp = jax.random.split(key, 4)
    Q = jax.random.normal(kq, (B, Sq, dim1), jnp.float32)
    K = jax.random.normal(kk, (B, Sk, dim2), jnp.float32)
    V = jax.random.normal(kv, (B, Sk, dim2), jnp.float32)
    params = make_params(kp, dim1, dim2, ff_dim)

    out = jax.jit(funicross)(Q, K, V, params)
    out = jax.block_until_ready(out)

    ref = funicross_ref(Q, K, V, params)
    assert out.shape == (B, Sq, dim1)
    max_diff = float(jnp.max(jnp.abs(out - ref)))
    # bf16 MXU operands/intermediates + approx reciprocal -> loosened tolerance vs f32 ref.
    assert jnp.allclose(out, ref, atol=5e-2, rtol=5e-2), (
        f"mismatch vs JAX reference, max|diff|={max_diff}")

    # TODO(synk): dropout (training mode) not implemented; kernel matches eval-mode forward.
    print("KERNEL_OK")
</pallas_src>

<mosaic_0001>
module attributes {stable_mosaic.version = 11 : i64} {
  func.func @funicross_kernel(%arg0: i32, %arg1: i32, %arg2: memref<2x8x128xf32, #tpu.memory_space<vmem>>, %arg3: memref<2x128x128xbf16, #tpu.memory_space<vmem>>, %arg4: memref<2x128x128xbf16, #tpu.memory_space<vmem>>, %arg5: memref<128x128xbf16, #tpu.memory_space<vmem>>, %arg6: memref<1x128xf32, #tpu.memory_space<vmem>>, %arg7: memref<128x128xbf16, #tpu.memory_space<vmem>>, %arg8: memref<1x128xf32, #tpu.memory_space<vmem>>, %arg9: memref<128x128xbf16, #tpu.memory_space<vmem>>, %arg10: memref<1x128xf32, #tpu.memory_space<vmem>>, %arg11: memref<1x128xf32, #tpu.memory_space<vmem>>, %arg12: memref<1x128xf32, #tpu.memory_space<vmem>>, %arg13: memref<128x128xbf16, #tpu.memory_space<vmem>>, %arg14: memref<1x128xf32, #tpu.memory_space<vmem>>, %arg15: memref<128x128xbf16, #tpu.memory_space<vmem>>, %arg16: memref<1x128xf32, #tpu.memory_space<vmem>>, %arg17: memref<1x128xf32, #tpu.memory_space<vmem>>, %arg18: memref<1x128xf32, #tpu.memory_space<vmem>>, %arg19: memref<2x8x128xf32, #tpu.memory_space<vmem>>) attributes {dimension_semantics = [#tpu.dimension_semantics<parallel>, #tpu.dimension_semantics<parallel>], iteration_bounds = array<i64: 1, 1>, scalar_prefetch = 0 : i64, scratch_operands = 0 : i64, tpu.core_type = #tpu.core_type<tc>, window_params = [{transform_indices = @transform_0, window_bounds = array<i64: 2, 8, 128>}, {transform_indices = @transform_1, window_bounds = array<i64: 2, 128, 128>}, {transform_indices = @transform_2, window_bounds = array<i64: 2, 128, 128>}, {pipeline_mode = #tpu.pipeline_mode<synchronous>, transform_indices = @transform_3, window_bounds = array<i64: 128, 128>}, {pipeline_mode = #tpu.pipeline_mode<synchronous>, transform_indices = @transform_4, window_bounds = array<i64: 1, 128>}, {pipeline_mode = #tpu.pipeline_mode<synchronous>, transform_indices = @transform_5, window_bounds = array<i64: 128, 128>}, {pipeline_mode = #tpu.pipeline_mode<synchronous>, transform_indices = @transform_6, window_bounds = array<i64: 1, 128>}, {pipeline_mode = #tpu.pipeline_mode<synchronous>, transform_indices = @transform_7, window_bounds = array<i64: 128, 128>}, {pipeline_mode = #tpu.pipeline_mode<synchronous>, transform_indices = @transform_8, window_bounds = array<i64: 1, 128>}, {pipeline_mode = #tpu.pipeline_mode<synchronous>, transform_indices = @transform_9, window_bounds = array<i64: 1, 128>}, {pipeline_mode = #tpu.pipeline_mode<synchronous>, transform_indices = @transform_10, window_bounds = array<i64: 1, 128>}, {pipeline_mode = #tpu.pipeline_mode<synchronous>, transform_indices = @transform_11, window_bounds = array<i64: 128, 128>}, {pipeline_mode = #tpu.pipeline_mode<synchronous>, transform_indices = @transform_12, window_bounds = array<i64: 1, 128>}, {pipeline_mode = #tpu.pipeline_mode<synchronous>, transform_indices = @transform_13, window_bounds = array<i64: 128, 128>}, {pipeline_mode = #tpu.pipeline_mode<synchronous>, transform_indices = @transform_14, window_bounds = array<i64: 1, 128>}, {pipeline_mode = #tpu.pipeline_mode<synchronous>, transform_indices = @transform_15, window_bounds = array<i64: 1, 128>}, {pipeline_mode = #tpu.pipeline_mode<synchronous>, transform_indices = @transform_16, window_bounds = array<i64: 1, 128>}, {transform_indices = @transform_17, window_bounds = array<i64: 2, 8, 128>}]} {
    %c0 = arith.constant 0 : index
    %c0_0 = arith.constant 0 : index
    %c0_1 = arith.constant 0 : index
    %0 = vector.load %arg2[%c0, %c0_0, %c0_1] : memref<2x8x128xf32, #tpu.memory_space<vmem>>, vector<2x8x128xf32>
    %c0_2 = arith.constant 0 : index
    %c0_3 = arith.constant 0 : index
    %c0_4 = arith.constant 0 : index
    %1 = vector.load %arg3[%c0_2, %c0_3, %c0_4] : memref<2x128x128xbf16, #tpu.memory_space<vmem>>, vector<2x128x128xbf16>
    %2 = vector.shape_cast %1 : vector<2x128x128xbf16> to vector<256x128xbf16>
    %c0_5 = arith.constant 0 : index
    %c0_6 = arith.constant 0 : index
    %c0_7 = arith.constant 0 : index
    %3 = vector.load %arg4[%c0_5, %c0_6, %c0_7] : memref<2x128x128xbf16, #tpu.memory_space<vmem>>, vector<2x128x128xbf16>
    %4 = vector.shape_cast %3 : vector<2x128x128xbf16> to vector<256x128xbf16>
    %c0_8 = arith.constant 0 : index
    %c0_9 = arith.constant 0 : index
    %5 = vector.load %arg5[%c0_8, %c0_9] : memref<128x128xbf16, #tpu.memory_space<vmem>>, vector<128x128xbf16>
    %cst = arith.constant dense<0.000000e+00> : vector<256x128xf32>
    %6 = tpu.matmul %2, %5, %cst {dimension_numbers = #tpu.dot_dimension_numbers<[1], [0], [0], [1], [0, 0, 1, 1], [], []>} : vector<256x128xbf16>, vector<128x128xbf16>, vector<256x128xf32> -> vector<256x128xf32>
    %c0_10 = arith.constant 0 : index
    %c0_11 = arith.constant 0 : index
    %7 = vector.load %arg6[%c0_10, %c0_11] : memref<1x128xf32, #tpu.memory_space<vmem>>, vector<1x128xf32>
    %8 = vector.broadcast %7 : vector<1x128xf32> to vector<256x128xf32>
    %9 = arith.addf %6, %8 : vector<256x128xf32>
    %10 = arith.truncf %9 : vector<256x128xf32> to vector<256x128xbf16>
    %11 = vector.shape_cast %10 : vector<256x128xbf16> to vector<2x128x128xbf16>
    %c0_12 = arith.constant 0 : index
    %c0_13 = arith.constant 0 : index
    %12 = vector.load %arg7[%c0_12, %c0_13] : memref<128x128xbf16, #tpu.memory_space<vmem>>, vector<128x128xbf16>
    %cst_14 = arith.constant dense<0.000000e+00> : vector<256x128xf32>
    %13 = tpu.matmul %4, %12, %cst_14 {dimension_numbers = #tpu.dot_dimension_numbers<[1], [0], [0], [1], [0, 0, 1, 1], [], []>} : vector<256x128xbf16>, vector<128x128xbf16>, vector<256x128xf32> -> vector<256x128xf32>
    %c0_15 = arith.constant 0 : index
    %c0_16 = arith.constant 0 : index
    %14 = vector.load %arg8[%c0_15, %c0_16] : memref<1x128xf32, #tpu.memory_space<vmem>>, vector<1x128xf32>
    %15 = vector.broadcast %14 : vector<1x128xf32> to vector<256x128xf32>
    %16 = arith.addf %13, %15 : vector<256x128xf32>
    %17 = arith.truncf %16 : vector<256x128xf32> to vector<256x128xbf16>
    %18 = vector.shape_cast %17 : vector<256x128xbf16> to vector<2x128x128xbf16>
    %19 = arith.truncf %0 : vector<2x8x128xf32> to vector<2x8x128xbf16>
    "tpu.trace_start"() <{level = 10 : i32, message = "bqd,bkd->bqk"}> : () -> ()
    %cst_17 = arith.constant dense<0.000000e+00> : vector<2x8x128xf32>
    %20 = tpu.matmul %19, %11, %cst_17 {dimension_numbers = #tpu.dot_dimension_numbers<[2], [2], [1], [1], [0, 0, 0, 1, 1, 1], [0], [0]>} : vector<2x8x128xbf16>, vector<2x128x128xbf16>, vector<2x8x128xf32> -> vector<2x8x128xf32>
    "tpu.trace_stop"() : () -> ()
    %21 = tpu.iota {dimensions = array<i32: 2>} : vector<2x8x128xi32>
    %c8_i32 = arith.constant 8 : i32
    %22 = vector.broadcast %c8_i32 : i32 to vector<2x8x128xi32>
    %23 = arith.cmpi slt, %21, %22 : vector<2x8x128xi32>
    %cst_18 = arith.constant -1.000000e+30 : f32
    %24 = vector.broadcast %cst_18 : f32 to vector<2x8x128xf32>
    %25 = arith.select %23, %20, %24 : vector<2x8x128xi1>, vector<2x8x128xf32>
    %cst_19 = arith.constant dense<0xFF800000> : vector<2x8xf32>
    %26 = vector.multi_reduction <maximumf>, %25, %cst_19 [2] : vector<2x8x128xf32> to vector<2x8xf32>
    %27 = vector.shape_cast %26 : vector<2x8xf32> to vector<2x8x1xf32>
    %28 = vector.broadcast %27 : vector<2x8x1xf32> to vector<2x8x128xf32>
    %29 = arith.subf %25, %28 : vector<2x8x128xf32>
    %30 = math.exp %29 : vector<2x8x128xf32>
    %cst_20 = arith.constant dense<0.000000e+00> : vector<2x8xf32>
    %31 = vector.multi_reduction <add>, %30, %cst_20 [2] : vector<2x8x128xf32> to vector<2x8xf32>
    %32 = vector.shape_cast %31 : vector<2x8xf32> to vector<2x8x1xf32>
    %33 = tpu.reciprocal %32 {approx = true} : vector<2x8x1xf32> -> vector<2x8x1xf32>
    %34 = vector.broadcast %33 : vector<2x8x1xf32> to vector<2x8x128xf32>
    %35 = arith.mulf %30, %34 : vector<2x8x128xf32>
    %36 = arith.truncf %35 : vector<2x8x128xf32> to vector<2x8x128xbf16>
    "tpu.trace_start"() <{level = 10 : i32, message = "bqk,bkd->bqd"}> : () -> ()
    %cst_21 = arith.constant dense<0.000000e+00> : vector<2x8x128xf32>
    %37 = tpu.matmul %36, %18, %cst_21 {dimension_numbers = #tpu.dot_dimension_numbers<[2], [1], [1], [2], [0, 0, 0, 1, 1, 2], [0], [0]>} : vector<2x8x128xbf16>, vector<2x128x128xbf16>, vector<2x8x128xf32> -> vector<2x8x128xf32>
    "tpu.trace_stop"() : () -> ()
    %38 = vector.shape_cast %37 : vector<2x8x128xf32> to vector<16x128xf32>
    %39 = arith.truncf %38 : vector<16x128xf32> to vector<16x128xbf16>
    %c0_22 = arith.constant 0 : index
    %c0_23 = arith.constant 0 : index
    %40 = vector.load %arg9[%c0_22, %c0_23] : memref<128x128xbf16, #tpu.memory_space<vmem>>, vector<128x128xbf16>
    %cst_24 = arith.constant dense<0.000000e+00> : vector<16x128xf32>
    %41 = tpu.matmul %39, %40, %cst_24 {dimension_numbers = #tpu.dot_dimension_numbers<[1], [0], [0], [1], [0, 0, 1, 1], [], []>} : vector<16x128xbf16>, vector<128x128xbf16>, vector<16x128xf32> -> vector<16x128xf32>
    %c0_25 = arith.constant 0 : index
    %c0_26 = arith.constant 0 : index
    %42 = vector.load %arg10[%c0_25, %c0_26] : memref<1x128xf32, #tpu.memory_space<vmem>>, vector<1x128xf32>
    %43 = vector.broadcast %42 : vector<1x128xf32> to vector<16x128xf32>
    %44 = arith.addf %41, %43 : vector<16x128xf32>
    %45 = vector.shape_cast %0 : vector<2x8x128xf32> to vector<16x128xf32>
    %46 = arith.addf %45, %44 : vector<16x128xf32>
    %c0_27 = arith.constant 0 : index
    %c0_28 = arith.constant 0 : index
    %47 = vector.load %arg11[%c0_27, %c0_28] : memref<1x128xf32, #tpu.memory_space<vmem>>, vector<1x128xf32>
    %c0_29 = arith.constant 0 : index
    %c0_30 = arith.constant 0 : index
    %48 = vector.load %arg12[%c0_29, %c0_30] : memref<1x128xf32, #tpu.memory_space<vmem>>, vector<1x128xf32>
    %cst_31 = arith.constant dense<0.000000e+00> : vector<16xf32>
    %49 = vector.multi_reduction <add>, %46, %cst_31 [1] : vector<16x128xf32> to vector<16xf32>
    %50 = vector.shape_cast %49 : vector<16xf32> to vector<16x1xf32>
    %cst_32 = arith.constant 3.125000e-02 : f32
    %51 = vector.broadcast %cst_32 : f32 to vector<16x1xf32>
    %52 = arith.mulf %50, %51 : vector<16x1xf32>
    %53 = arith.mulf %46, %46 : vector<16x128xf32>
    %cst_33 = arith.constant dense<0.000000e+00> : vector<16xf32>
    %54 = vector.multi_reduction <add>, %53, %cst_33 [1] : vector<16x128xf32> to vector<16xf32>
    %55 = vector.shape_cast %54 : vector<16xf32> to vector<16x1xf32>
    %cst_34 = arith.constant 3.125000e-02 : f32
    %56 = vector.broadcast %cst_34 : f32 to vector<16x1xf32>
    %57 = arith.mulf %55, %56 : vector<16x1xf32>
    %58 = arith.mulf %52, %52 : vector<16x1xf32>
    %59 = arith.subf %57, %58 : vector<16x1xf32>
    %cst_35 = arith.constant 0.000000e+00 : f32
    %60 = vector.broadcast %cst_35 : f32 to vector<16x1xf32>
    %61 = arith.maximumf %59, %60 : vector<16x1xf32>
    %cst_36 = arith.constant 9.99999974E-6 : f32
    %62 = vector.broadcast %cst_36 : f32 to vector<16x1xf32>
    %63 = arith.addf %61, %62 : vector<16x1xf32>
    %64 = math.rsqrt %63 : vector<16x1xf32>
    %65 = vector.broadcast %52 : vector<16x1xf32> to vector<16x128xf32>
    %66 = arith.subf %46, %65 : vector<16x128xf32>
    %67 = vector.broadcast %64 : vector<16x1xf32> to vector<16x128xf32>
    %68 = arith.mulf %66, %67 : vector<16x128xf32>
    %69 = vector.broadcast %47 : vector<1x128xf32> to vector<16x128xf32>
    %70 = arith.mulf %68, %69 : vector<16x128xf32>
    %71 = vector.broadcast %48 : vector<1x128xf32> to vector<16x128xf32>
    %72 = arith.addf %70, %71 : vector<16x128xf32>
    %73 = arith.truncf %72 : vector<16x128xf32> to vector<16x128xbf16>
    %c0_37 = arith.constant 0 : index
    %c0_38 = arith.constant 0 : index
    %74 = vector.load %arg13[%c0_37, %c0_38] : memref<128x128xbf16, #tpu.memory_space<vmem>>, vector<128x128xbf16>
    %cst_39 = arith.constant dense<0.000000e+00> : vector<16x128xf32>
    %75 = tpu.matmul %73, %74, %cst_39 {dimension_numbers = #tpu.dot_dimension_numbers<[1], [0], [0], [1], [0, 0, 1, 1], [], []>} : vector<16x128xbf16>, vector<128x128xbf16>, vector<16x128xf32> -> vector<16x128xf32>
    %c0_40 = arith.constant 0 : index
    %c0_41 = arith.constant 0 : index
    %76 = vector.load %arg14[%c0_40, %c0_41] : memref<1x128xf32, #tpu.memory_space<vmem>>, vector<1x128xf32>
    %77 = vector.broadcast %76 : vector<1x128xf32> to vector<16x128xf32>
    %78 = arith.addf %75, %77 : vector<16x128xf32>
    %cst_42 = arith.constant 0.000000e+00 : f32
    %79 = vector.broadcast %cst_42 : f32 to vector<16x128xf32>
    %80 = arith.maximumf %78, %79 : vector<16x128xf32>
    %81 = arith.truncf %80 : vector<16x128xf32> to vector<16x128xbf16>
    %c0_43 = arith.constant 0 : index
    %c0_44 = arith.constant 0 : index
    %82 = vector.load %arg15[%c0_43, %c0_44] : memref<128x128xbf16, #tpu.memory_space<vmem>>, vector<128x128xbf16>
    %cst_45 = arith.constant dense<0.000000e+00> : vector<16x128xf32>
    %83 = tpu.matmul %81, %82, %cst_45 {dimension_numbers = #tpu.dot_dimension_numbers<[1], [0], [0], [1], [0, 0, 1, 1], [], []>} : vector<16x128xbf16>, vector<128x128xbf16>, vector<16x128xf32> -> vector<16x128xf32>
    %c0_46 = arith.constant 0 : index
    %c0_47 = arith.constant 0 : index
    %84 = vector.load %arg16[%c0_46, %c0_47] : memref<1x128xf32, #tpu.memory_space<vmem>>, vector<1x128xf32>
    %85 = vector.broadcast %84 : vector<1x128xf32> to vector<16x128xf32>
    %86 = arith.addf %83, %85 : vector<16x128xf32>
    %87 = arith.addf %72, %86 : vector<16x128xf32>
    %c0_48 = arith.constant 0 : index
    %c0_49 = arith.constant 0 : index
    %88 = vector.load %arg17[%c0_48, %c0_49] : memref<1x128xf32, #tpu.memory_space<vmem>>, vector<1x128xf32>
    %c0_50 = arith.constant 0 : index
    %c0_51 = arith.constant 0 : index
    %89 = vector.load %arg18[%c0_50, %c0_51] : memref<1x128xf32, #tpu.memory_space<vmem>>, vector<1x128xf32>
    %cst_52 = arith.constant dense<0.000000e+00> : vector<16xf32>
    %90 = vector.multi_reduction <add>, %87, %cst_52 [1] : vector<16x128xf32> to vector<16xf32>
    %91 = vector.shape_cast %90 : vector<16xf32> to vector<16x1xf32>
    %cst_53 = arith.constant 3.125000e-02 : f32
    %92 = vector.broadcast %cst_53 : f32 to vector<16x1xf32>
    %93 = arith.mulf %91, %92 : vector<16x1xf32>
    %94 = arith.mulf %87, %87 : vector<16x128xf32>
    %cst_54 = arith.constant dense<0.000000e+00> : vector<16xf32>
    %95 = vector.multi_reduction <add>, %94, %cst_54 [1] : vector<16x128xf32> to vector<16xf32>
    %96 = vector.shape_cast %95 : vector<16xf32> to vector<16x1xf32>
    %cst_55 = arith.constant 3.125000e-02 : f32
    %97 = vector.broadcast %cst_55 : f32 to vector<16x1xf32>
    %98 = arith.mulf %96, %97 : vector<16x1xf32>
    %99 = arith.mulf %93, %93 : vector<16x1xf32>
    %100 = arith.subf %98, %99 : vector<16x1xf32>
    %cst_56 = arith.constant 0.000000e+00 : f32
    %101 = vector.broadcast %cst_56 : f32 to vector<16x1xf32>
    %102 = arith.maximumf %100, %101 : vector<16x1xf32>
    %cst_57 = arith.constant 9.99999974E-6 : f32
    %103 = vector.broadcast %cst_57 : f32 to vector<16x1xf32>
    %104 = arith.addf %102, %103 : vector<16x1xf32>
    %105 = math.rsqrt %104 : vector<16x1xf32>
    %106 = vector.broadcast %93 : vector<16x1xf32> to vector<16x128xf32>
    %107 = arith.subf %87, %106 : vector<16x128xf32>
    %108 = vector.broadcast %105 : vector<16x1xf32> to vector<16x128xf32>
    %109 = arith.mulf %107, %108 : vector<16x128xf32>
    %110 = vector.broadcast %88 : vector<1x128xf32> to vector<16x128xf32>
    %111 = arith.mulf %109, %110 : vector<16x128xf32>
    %112 = vector.broadcast %89 : vector<1x128xf32> to vector<16x128xf32>
    %113 = arith.addf %111, %112 : vector<16x128xf32>
    %114 = vector.shape_cast %113 : vector<16x128xf32> to vector<2x8x128xf32>
    %c0_58 = arith.constant 0 : index
    %c0_59 = arith.constant 0 : index
    %c0_60 = arith.constant 0 : index
    %115 = vector.load %arg19[%c0_58, %c0_59, %c0_60] : memref<2x8x128xf32, #tpu.memory_space<vmem>>, vector<2x8x128xf32>
    tpu.vector_store %arg19[%c0_58, %c0_59, %c0_60], %114 {strides = array<i32>} : memref<2x8x128xf32, #tpu.memory_space<vmem>>, vector<2x8x128xf32>,
    return
  }
  func.func @transform_0(%arg0: i32, %arg1: i32) -> (i32, i32, i32) {
    %c0_i32 = arith.constant 0 : i32
    %c0_i32_0 = arith.constant 0 : i32
    return %arg0, %arg1, %c0_i32 : i32, i32, i32
  }
  func.func @transform_1(%arg0: i32, %arg1: i32) -> (i32, i32, i32) {
    %c0_i32 = arith.constant 0 : i32
    %c0_i32_0 = arith.constant 0 : i32
    %c0_i32_1 = arith.constant 0 : i32
    return %arg0, %c0_i32, %c0_i32_0 : i32, i32, i32
  }
  func.func @transform_2(%arg0: i32, %arg1: i32) -> (i32, i32, i32) {
    %c0_i32 = arith.constant 0 : i32
    %c0_i32_0 = arith.constant 0 : i32
    %c0_i32_1 = arith.constant 0 : i32
    return %arg0, %c0_i32, %c0_i32_0 : i32, i32, i32
  }
  func.func @transform_3(%arg0: i32, %arg1: i32) -> (i32, i32) {
    %c0_i32 = arith.constant 0 : i32
    %c0_i32_0 = arith.constant 0 : i32
    %c0_i32_1 = arith.constant 0 : i32
    return %c0_i32, %c0_i32_0 : i32, i32
  }
  func.func @transform_4(%arg0: i32, %arg1: i32) -> (i32, i32) {
    %c0_i32 = arith.constant 0 : i32
    %c0_i32_0 = arith.constant 0 : i32
    %c0_i32_1 = arith.constant 0 : i32
    return %c0_i32, %c0_i32_0 : i32, i32
  }
  func.func @transform_5(%arg0: i32, %arg1: i32) -> (i32, i32) {
    %c0_i32 = arith.constant 0 : i32
    %c0_i32_0 = arith.constant 0 : i32
    %c0_i32_1 = arith.constant 0 : i32
    return %c0_i32, %c0_i32_0 : i32, i32
  }
  func.func @transform_6(%arg0: i32, %arg1: i32) -> (i32, i32) {
    %c0_i32 = arith.constant 0 : i32
    %c0_i32_0 = arith.constant 0 : i32
    %c0_i32_1 = arith.constant 0 : i32
    return %c0_i32, %c0_i32_0 : i32, i32
  }
  func.func @transform_7(%arg0: i32, %arg1: i32) -> (i32, i32) {
    %c0_i32 = arith.constant 0 : i32
    %c0_i32_0 = arith.constant 0 : i32
    %c0_i32_1 = arith.constant 0 : i32
    return %c0_i32, %c0_i32_0 : i32, i32
  }
  func.func @transform_8(%arg0: i32, %arg1: i32) -> (i32, i32) {
    %c0_i32 = arith.constant 0 : i32
    %c0_i32_0 = arith.constant 0 : i32
    %c0_i32_1 = arith.constant 0 : i32
    return %c0_i32, %c0_i32_0 : i32, i32
  }
  func.func @transform_9(%arg0: i32, %arg1: i32) -> (i32, i32) {
    %c0_i32 = arith.constant 0 : i32
    %c0_i32_0 = arith.constant 0 : i32
    %c0_i32_1 = arith.constant 0 : i32
    return %c0_i32, %c0_i32_0 : i32, i32
  }
  func.func @transform_10(%arg0: i32, %arg1: i32) -> (i32, i32) {
    %c0_i32 = arith.constant 0 : i32
    %c0_i32_0 = arith.constant 0 : i32
    %c0_i32_1 = arith.constant 0 : i32
    return %c0_i32, %c0_i32_0 : i32, i32
  }
  func.func @transform_11(%arg0: i32, %arg1: i32) -> (i32, i32) {
    %c0_i32 = arith.constant 0 : i32
    %c0_i32_0 = arith.constant 0 : i32
    %c0_i32_1 = arith.constant 0 : i32
    return %c0_i32, %c0_i32_0 : i32, i32
  }
  func.func @transform_12(%arg0: i32, %arg1: i32) -> (i32, i32) {
    %c0_i32 = arith.constant 0 : i32
    %c0_i32_0 = arith.constant 0 : i32
    %c0_i32_1 = arith.constant 0 : i32
    return %c0_i32, %c0_i32_0 : i32, i32
  }
  func.func @transform_13(%arg0: i32, %arg1: i32) -> (i32, i32) {
    %c0_i32 = arith.constant 0 : i32
    %c0_i32_0 = arith.constant 0 : i32
    %c0_i32_1 = arith.constant 0 : i32
    return %c0_i32, %c0_i32_0 : i32, i32
  }
  func.func @transform_14(%arg0: i32, %arg1: i32) -> (i32, i32) {
    %c0_i32 = arith.constant 0 : i32
    %c0_i32_0 = arith.constant 0 : i32
    %c0_i32_1 = arith.constant 0 : i32
    return %c0_i32, %c0_i32_0 : i32, i32
  }
  func.func @transform_15(%arg0: i32, %arg1: i32) -> (i32, i32) {
    %c0_i32 = arith.constant 0 : i32
    %c0_i32_0 = arith.constant 0 : i32
    %c0_i32_1 = arith.constant 0 : i32
    return %c0_i32, %c0_i32_0 : i32, i32
  }
  func.func @transform_16(%arg0: i32, %arg1: i32) -> (i32, i32) {
    %c0_i32 = arith.constant 0 : i32
    %c0_i32_0 = arith.constant 0 : i32
    %c0_i32_1 = arith.constant 0 : i32
    return %c0_i32, %c0_i32_0 : i32, i32
  }
  func.func @transform_17(%arg0: i32, %arg1: i32) -> (i32, i32, i32) {
    %c0_i32 = arith.constant 0 : i32
    %c0_i32_0 = arith.constant 0 : i32
    return %arg0, %arg1, %c0_i32 : i32, i32, i32
  }
}

</mosaic_0001>

<llo_original>
// kernel: funicross.1
$region0: #{funicross.1}
  #allocation0 [shape = 'u32[]', space=smem, size = 0x4, offset = 0x4, fixed_abs, tag = 'smem constant byte address 0x4 - core index']
  #allocation1 [shape = 'u32[144,128]{1,0:T(1,128)}', space=vmem, size = 0x12000, scoped, tag = 'internal scratch']
  %s0 = inlined_call_operand.vmem [shape: f32[2,8,128], index: 0, kind: input, shape index: {}]
  %s1 = inlined_call_operand.vmem [shape: bf16[2,128,128], index: 1, kind: input, shape index: {}]
  %s2 = inlined_call_operand.vmem [shape: bf16[2,128,128], index: 2, kind: input, shape index: {}]
  %s3 = inlined_call_operand.vmem [shape: bf16[128,128], index: 3, kind: input, shape index: {}]
  %s4 = inlined_call_operand.vmem [shape: f32[1,128], index: 4, kind: input, shape index: {}]
  %s5 = inlined_call_operand.vmem [shape: bf16[128,128], index: 5, kind: input, shape index: {}]
  %s6 = inlined_call_operand.vmem [shape: f32[1,128], index: 6, kind: input, shape index: {}]
  %s7 = inlined_call_operand.vmem [shape: bf16[128,128], index: 7, kind: input, shape index: {}]
  %s8 = inlined_call_operand.vmem [shape: f32[1,128], index: 8, kind: input, shape index: {}]
  %s9 = inlined_call_operand.vmem [shape: f32[1,128], index: 9, kind: input, shape index: {}]
  %s10 = inlined_call_operand.vmem [shape: f32[1,128], index: 10, kind: input, shape index: {}]
  %s11 = inlined_call_operand.vmem [shape: bf16[128,128], index: 11, kind: input, shape index: {}]
  %s12 = inlined_call_operand.vmem [shape: f32[1,128], index: 12, kind: input, shape index: {}]
  %s13 = inlined_call_operand.vmem [shape: bf16[128,128], index: 13, kind: input, shape index: {}]
  %s14 = inlined_call_operand.vmem [shape: f32[1,128], index: 14, kind: input, shape index: {}]
  %s15 = inlined_call_operand.vmem [shape: f32[1,128], index: 15, kind: input, shape index: {}]
  %s16 = inlined_call_operand.vmem [shape: f32[1,128], index: 16, kind: input, shape index: {}]
  %s17 = inlined_call_operand.hbm [shape: f32[2,8,128], index: 17, kind: output, shape index: {}]
  %s18 = sld [smem:[#allocation0]]
  $region78: #{funicross.1} parent=0
    _
  %s20 = ssub.s32 1, %s18
  %s21 = scalar_select 0, %s20, %s18
  $region1: #{funicross.1} parent=0
    #allocation2 [shape = 'u8[8192]{0}', space=vmem, size = 0x2000, scoped, tag = 'output window, operand 0, single buffered']
    #allocation3 [shape = 's32[1]{0}', space=sflag, size = 0x4, scoped, tag = 'scoped memory for funicross.1']
    %22 = vsyncpa [#allocation3], 0
    // Predicated region
    $region2: #{funicross.1} parent=1 // pred_check
      _
    $region3: #{funicross.1} parent=1 // pred_check_branch
      %24 = sbr.rel (0) target = $region5
    $region4: #{funicross.1} parent=1 // pred_region
      _
    $region5: #{funicross.1} parent=1 // pred_fallthru
      _
    // Predicated region
    $region6: #{funicross.1} parent=1 // pred_check
      _
    $region7: #{funicross.1} parent=1 // pred_check_branch
      %26 = sbr.rel (0) target = $region9
    $region8: #{funicross.1} parent=1 // pred_region
      _
    $region9: #{funicross.1} parent=1 // pred_fallthru
      _
    // Predicated region
    $region10: #{funicross.1} parent=1 // pred_check
      _
    $region11: #{funicross.1} parent=1 // pred_check_branch
      %28 = sbr.rel (0) target = $region13
    $region12: #{funicross.1} parent=1 // pred_region
      _
    $region13: #{funicross.1} parent=1 // pred_fallthru
      _
    // Predicated region
    $region14: #{funicross.1} parent=1 // pred_check
      _
    $region15: #{funicross.1} parent=1 // pred_check_branch
      %30 = sbr.rel (0) target = $region17
    $region16: #{funicross.1} parent=1 // pred_region
      _
    $region17: #{funicross.1} parent=1 // pred_fallthru
      _
    // Predicated region
    $region18: #{funicross.1} parent=1 // pred_check
      _
    $region19: #{funicross.1} parent=1 // pred_check_branch
      %32 = sbr.rel (0) target = $region21
    $region20: #{funicross.1} parent=1 // pred_region
      _
    $region21: #{funicross.1} parent=1 // pred_fallthru
      _
    // Predicated region
    $region22: #{funicross.1} parent=1 // pred_check
      _
    $region23: #{funicross.1} parent=1 // pred_check_branch
      %34 = sbr.rel (0) target = $region25
    $region24: #{funicross.1} parent=1 // pred_region
      _
    $region25: #{funicross.1} parent=1 // pred_fallthru
      _
    // Predicated region
    $region26: #{funicross.1} parent=1 // pred_check
      _
    $region27: #{funicross.1} parent=1 // pred_check_branch
      %36 = sbr.rel (0) target = $region29
    $region28: #{funicross.1} parent=1 // pred_region
      _
    $region29: #{funicross.1} parent=1 // pred_fallthru
      _
    // Predicated region
    $region30: #{funicross.1} parent=1 // pred_check
      _
    $region31: #{funicross.1} parent=1 // pred_check_branch
      %38 = sbr.rel (0) target = $region33
    $region32: #{funicross.1} parent=1 // pred_region
      _
    $region33: #{funicross.1} parent=1 // pred_fallthru
      _
    // Predicated region
    $region34: #{funicross.1} parent=1 // pred_check
      _
    $region35: #{funicross.1} parent=1 // pred_check_branch
      %40 = sbr.rel (0) target = $region37
    $region36: #{funicross.1} parent=1 // pred_region
      _
    $region37: #{funicross.1} parent=1 // pred_fallthru
      _
    // Predicated region
    $region38: #{funicross.1} parent=1 // pred_check
      _
    $region39: #{funicross.1} parent=1 // pred_check_branch
      %42 = sbr.rel (0) target = $region41
    $region40: #{funicross.1} parent=1 // pred_region
      _
    $region41: #{funicross.1} parent=1 // pred_fallthru
      _
    // Predicated region
    $region42: #{funicross.1} parent=1 // pred_check
      _
    $region43: #{funicross.1} parent=1 // pred_check_branch
      %44 = sbr.rel (0) target = $region45
    $region44: #{funicross.1} parent=1 // pred_region
      _
    $region45: #{funicross.1} parent=1 // pred_fallthru
      _
    // Predicated region
    $region46: #{funicross.1} parent=1 // pred_check
      _
    $region47: #{funicross.1} parent=1 // pred_check_branch
      %46 = sbr.rel (0) target = $region49
    $region48: #{funicross.1} parent=1 // pred_region
      _
    $region49: #{funicross.1} parent=1 // pred_fallthru
      _
    // Predicated region
    $region50: #{funicross.1} parent=1 // pred_check
      _
    $region51: #{funicross.1} parent=1 // pred_check_branch
      %48 = sbr.rel (0) target = $region53
    $region52: #{funicross.1} parent=1 // pred_region
      _
    $region53: #{funicross.1} parent=1 // pred_fallthru
      _
    // Predicated region
    $region54: #{funicross.1} parent=1 // pred_check
      _
    $region55: #{funicross.1} parent=1 // pred_check_branch
      %50 = sbr.rel (0) target = $region57
    $region56: #{funicross.1} parent=1 // pred_region
      _
    $region57: #{funicross.1} parent=1 // pred_fallthru
      _
    // Predicated region
    $region58: #{funicross.1} parent=1 // pred_check
      _
    $region59: #{funicross.1} parent=1 // pred_check_branch
      %52 = sbr.rel (0) target = $region61
    $region60: #{funicross.1} parent=1 // pred_region
      _
    $region61: #{funicross.1} parent=1 // pred_fallthru
      _
    // Predicated region
    $region62: #{funicross.1} parent=1 // pred_check
      _
    $region63: #{funicross.1} parent=1 // pred_check_branch
      %54 = sbr.rel (0) target = $region65
    $region64: #{funicross.1} parent=1 // pred_region
      _
    $region65: #{funicross.1} parent=1 // pred_fallthru
      _
    // Predicated region
    $region66: #{funicross.1} parent=1 // pred_check
      _
    $region67: #{funicross.1} parent=1 // pred_check_branch
      %56 = sbr.rel (0) target = $region69
    $region68: #{funicross.1} parent=1 // pred_region
      _
    $region69: #{funicross.1} parent=1 // pred_fallthru
      _
    %v58 = vld [vmem:[%s0] sm:$0xff]
    %v59 = vld [vmem:[%s0 + $0x8] sm:$0xff]
    %v60 = vld [vmem:[%s1] sm:$0xf]
    %v61 = vld [vmem:[%s1 + $0x4] sm:$0xf]
    %v62 = vld [vmem:[%s1 + $0x8] sm:$0xf]
    %v63 = vld [vmem:[%s1 + $0xc] sm:$0xf]
    %v64 = vld [vmem:[%s1 + $0x10] sm:$0xf]
    %v65 = vld [vmem:[%s1 + $0x14] sm:$0xf]
    %v66 = vld [vmem:[%s1 + $0x18] sm:$0xf]
    %v67 = vld [vmem:[%s1 + $0x1c] sm:$0xf]
    %v68 = vld [vmem:[%s1 + $0x20] sm:$0xf]
    %v69 = vld [vmem:[%s1 + $0x24] sm:$0xf]
    %v70 = vld [vmem:[%s1 + $0x28] sm:$0xf]
    %v71 = vld [vmem:[%s1 + $0x2c] sm:$0xf]
    %v72 = vld [vmem:[%s1 + $0x30] sm:$0xf]
    %v73 = vld [vmem:[%s1 + $0x34] sm:$0xf]
    %v74 = vld [vmem:[%s1 + $0x38] sm:$0xf]
    %v75 = vld [vmem:[%s1 + $0x3c] sm:$0xf]
    %v76 = vld [vmem:[%s1 + $0x40] sm:$0xf]
    %v77 = vld [vmem:[%s1 + $0x44] sm:$0xf]
    %v78 = vld [vmem:[%s1 + $0x48] sm:$0xf]
    %v79 = vld [vmem:[%s1 + $0x4c] sm:$0xf]
    %v80 = vld [vmem:[%s1 + $0x50] sm:$0xf]
    %v81 = vld [vmem:[%s1 + $0x54] sm:$0xf]
    %v82 = vld [vmem:[%s1 + $0x58] sm:$0xf]
    %v83 = vld [vmem:[%s1 + $0x5c] sm:$0xf]
    %v84 = vld [vmem:[%s1 + $0x60] sm:$0xf]
    %v85 = vld [vmem:[%s1 + $0x64] sm:$0xf]
    %v86 = vld [vmem:[%s1 + $0x68] sm:$0xf]
    %v87 = vld [vmem:[%s1 + $0x6c] sm:$0xf]
    %v88 = vld [vmem:[%s1 + $0x70] sm:$0xf]
    %v89 = vld [vmem:[%s1 + $0x74] sm:$0xf]
    %v90 = vld [vmem:[%s1 + $0x78] sm:$0xf]
    %v91 = vld [vmem:[%s1 + $0x7c] sm:$0xf]
    %v92 = vld [vmem:[%s2] sm:$0xf]
    %v93 = vld [vmem:[%s2 + $0x4] sm:$0xf]
    %v94 = vld [vmem:[%s2 + $0x8] sm:$0xf]
    %v95 = vld [vmem:[%s2 + $0xc] sm:$0xf]
    %v96 = vld [vmem:[%s2 + $0x10] sm:$0xf]
    %v97 = vld [vmem:[%s2 + $0x14] sm:$0xf]
    %v98 = vld [vmem:[%s2 + $0x18] sm:$0xf]
    %v99 = vld [vmem:[%s2 + $0x1c] sm:$0xf]
    %v100 = vld [vmem:[%s2 + $0x20] sm:$0xf]
    %v101 = vld [vmem:[%s2 + $0x24] sm:$0xf]
    %v102 = vld [vmem:[%s2 + $0x28] sm:$0xf]
    %v103 = vld [vmem:[%s2 + $0x2c] sm:$0xf]
    %v104 = vld [vmem:[%s2 + $0x30] sm:$0xf]
    %v105 = vld [vmem:[%s2 + $0x34] sm:$0xf]
    %v106 = vld [vmem:[%s2 + $0x38] sm:$0xf]
    %v107 = vld [vmem:[%s2 + $0x3c] sm:$0xf]
    %v108 = vld [vmem:[%s2 + $0x40] sm:$0xf]
    %v109 = vld [vmem:[%s2 + $0x44] sm:$0xf]
    %v110 = vld [vmem:[%s2 + $0x48] sm:$0xf]
    %v111 = vld [vmem:[%s2 + $0x4c] sm:$0xf]
    %v112 = vld [vmem:[%s2 + $0x50] sm:$0xf]
    %v113 = vld [vmem:[%s2 + $0x54] sm:$0xf]
    %v114 = vld [vmem:[%s2 + $0x58] sm:$0xf]
    %v115 = vld [vmem:[%s2 + $0x5c] sm:$0xf]
    %v116 = vld [vmem:[%s2 + $0x60] sm:$0xf]
    %v117 = vld [vmem:[%s2 + $0x64] sm:$0xf]
    %v118 = vld [vmem:[%s2 + $0x68] sm:$0xf]
    %v119 = vld [vmem:[%s2 + $0x6c] sm:$0xf]
    %v120 = vld [vmem:[%s2 + $0x70] sm:$0xf]
    %v121 = vld [vmem:[%s2 + $0x74] sm:$0xf]
    %v122 = vld [vmem:[%s2 + $0x78] sm:$0xf]
    %v123 = vld [vmem:[%s2 + $0x7c] sm:$0xf]
    %v124 = vld [vmem:[%s3] sm:$0xf]
    %v125 = vld [vmem:[%s3 + $0x4] sm:$0xf]
    %v126 = vld [vmem:[%s3 + $0x8] sm:$0xf]
    %v127 = vld [vmem:[%s3 + $0xc] sm:$0xf]
    %v128 = vld [vmem:[%s3 + $0x10] sm:$0xf]
    %v129 = vld [vmem:[%s3 + $0x14] sm:$0xf]
    %v130 = vld [vmem:[%s3 + $0x18] sm:$0xf]
    %v131 = vld [vmem:[%s3 + $0x1c] sm:$0xf]
    %v132 = vld [vmem:[%s3 + $0x20] sm:$0xf]
    %v133 = vld [vmem:[%s3 + $0x24] sm:$0xf]
    %v134 = vld [vmem:[%s3 + $0x28] sm:$0xf]
    %v135 = vld [vmem:[%s3 + $0x2c] sm:$0xf]
    %v136 = vld [vmem:[%s3 + $0x30] sm:$0xf]
    %v137 = vld [vmem:[%s3 + $0x34] sm:$0xf]
    %v138 = vld [vmem:[%s3 + $0x38] sm:$0xf]
    %v139 = vld [vmem:[%s3 + $0x3c] sm:$0xf]
    %v140 = vld [vmem:[%s4] sm:$0x1]
    %v142 = vlaneseq
    %v143 = vshrl.u32 %v142, 7
    %v144 = vsub.s32 0, %v143
    %v145 = vrot.slane %v140, %v144
    %v179 = vunpack.c.l.b16 %v60
    %v180 = vunpack.c.l.b16 %v61
    %v181 = vunpack.c.l.b16 %v62
    %v182 = vunpack.c.l.b16 %v63
    %v183 = vunpack.c.l.b16 %v64
    %v184 = vunpack.c.l.b16 %v65
    %v185 = vunpack.c.l.b16 %v66
    %v186 = vunpack.c.l.b16 %v67
    %v187 = vunpack.c.l.b16 %v68
    %v188 = vunpack.c.l.b16 %v69
    %v189 = vunpack.c.l.b16 %v70
    %v190 = vunpack.c.l.b16 %v71
    %v191 = vunpack.c.l.b16 %v72
    %v192 = vunpack.c.l.b16 %v73
    %v193 = vunpack.c.l.b16 %v74
    %v194 = vunpack.c.l.b16 %v75
    %v195 = vunpack.c.l.b16 %v76
    %v196 = vunpack.c.l.b16 %v77
    %v197 = vunpack.c.l.b16 %v78
    %v198 = vunpack.c.l.b16 %v79
    %v199 = vunpack.c.l.b16 %v80
    %v200 = vunpack.c.l.b16 %v81
    %v201 = vunpack.c.l.b16 %v82
    %v202 = vunpack.c.l.b16 %v83
    %v203 = vunpack.c.l.b16 %v84
    %v204 = vunpack.c.l.b16 %v85
    %v205 = vunpack.c.l.b16 %v86
    %v206 = vunpack.c.l.b16 %v87
    %v207 = vunpack.c.l.b16 %v88
    %v208 = vunpack.c.l.b16 %v89
    %v209 = vunpack.c.l.b16 %v90
    %v210 = vunpack.c.l.b16 %v91
    %v211 = vpack.c.b16 %v180, %v179
    %v212 = vpack.c.b16 %v182, %v181
    %v213 = vpack.c.b16 %v184, %v183
    %v214 = vpack.c.b16 %v186, %v185
    %v215 = vpack.c.b16 %v188, %v187
    %v216 = vpack.c.b16 %v190, %v189
    %v217 = vpack.c.b16 %v192, %v191
    %v218 = vpack.c.b16 %v194, %v193
    %v219 = vpack.c.b16 %v196, %v195
    %v220 = vpack.c.b16 %v198, %v197
    %v221 = vpack.c.b16 %v200, %v199
    %v222 = vpack.c.b16 %v202, %v201
    %v223 = vpack.c.b16 %v204, %v203
    %v224 = vpack.c.b16 %v206, %v205
    %v225 = vpack.c.b16 %v208, %v207
    %v226 = vpack.c.b16 %v210, %v209
    %v259 = vunpack.c.l.b16 %v124
    %v260 = vunpack.c.l.b16 %v125
    %v261 = vunpack.c.l.b16 %v126
    %v262 = vunpack.c.l.b16 %v127
    %v263 = vunpack.c.l.b16 %v128
    %v264 = vunpack.c.l.b16 %v129
    %v265 = vunpack.c.l.b16 %v130
    %v266 = vunpack.c.l.b16 %v131
    %v267 = vunpack.c.l.b16 %v132
    %v268 = vunpack.c.l.b16 %v133
    %v269 = vunpack.c.l.b16 %v134
    %v270 = vunpack.c.l.b16 %v135
    %v271 = vunpack.c.l.b16 %v136
    %v272 = vunpack.c.l.b16 %v137
    %v273 = vunpack.c.l.b16 %v138
    %v274 = vunpack.c.l.b16 %v139
    %v275 = vpack.c.b16 %v260, %v259
    %v276 = vpack.c.b16 %v262, %v261
    %v277 = vpack.c.b16 %v264, %v263
    %v278 = vpack.c.b16 %v266, %v265
    %v279 = vpack.c.b16 %v268, %v267
    %v280 = vpack.c.b16 %v270, %v269
    %v281 = vpack.c.b16 %v272, %v271
    %v282 = vpack.c.b16 %v274, %v273
    %291 = vmatprep.subr.bf16.mxu0 0
    %292 = vmatpush1.bf16.msra.mxu0 %v275
    %293 = vmatprep.subr.bf16.mxu0 0
    %294 = vmatpush1.bf16.msra.mxu0 %v276
    %295 = vmatprep.subr.bf16.mxu0 0
    %296 = vmatpush1.bf16.msra.mxu0 %v277
    %297 = vmatprep.subr.bf16.mxu0 0
    %298 = vmatpush1.bf16.msra.mxu0 %v278
    %299 = vmatprep.subr.bf16.mxu0 0
    %300 = vmatpush1.bf16.msra.mxu0 %v279
    %301 = vmatprep.subr.bf16.mxu0 0
    %302 = vmatpush1.bf16.msra.mxu0 %v280
    %303 = vmatprep.subr.bf16.mxu0 0
    %304 = vmatpush1.bf16.msra.mxu0 %v281
    %305 = vmatprep.subr.bf16.mxu0 0
    %306 = vmatpush1.bf16.msra.mxu0 %v282
    %307 = vmatprep.subr.bf16.mxu0 0
    %308 = vmatpush1.bf16.msra.mxu0 0
    %309 = vmatprep.subr.bf16.mxu0 0
    %310 = vmatpush1.bf16.msra.mxu0 0
    %311 = vmatprep.subr.bf16.mxu0 0
    %312 = vmatpush1.bf16.msra.mxu0 0
    %313 = vmatprep.subr.bf16.mxu0 0
    %314 = vmatpush1.bf16.msra.mxu0 0
    %315 = vmatprep.subr.bf16.mxu0 0
    %316 = vmatpush1.bf16.msra.mxu0 0
    %317 = vmatprep.subr.bf16.mxu0 0
    %318 = vmatpush1.bf16.msra.mxu0 0
    %319 = vmatprep.subr.bf16.mxu0 0
    %320 = vmatpush1.bf16.msra.mxu0 0
    %321 = vmatprep.subr.bf16.mxu0 0
    %322 = vmatpush1.bf16.msra.mxu0 0
    %323 = vmatprep.mubr.bf16.mxu0 0
    %324 = vmatmul.mubr.bf16.gmra.mrb[0].mxu0 %v211
    %v325 = vpop.f32.mrb[0].mxu0
    %v326 = vadd.f32 %v145, %v325
    %v327 = vpop.f32.mrb[0].mxu0
    %v328 = vpop.f32.mrb[0].mxu0
    %v329 = vadd.f32 %v145, %v328
    %v330 = vpop.f32.mrb[0].mxu0
    %331 = vmatprep.mubr.bf16.mxu0 0
    %332 = vmatmul.mubr.bf16.gmra.mrb[0].mxu0 %v212
    %v333 = vpop.f32.mrb[0].mxu0
    %v334 = vadd.f32 %v145, %v333
    %v335 = vpop.f32.mrb[0].mxu0
    %v336 = vpop.f32.mrb[0].mxu0
    %v337 = vadd.f32 %v145, %v336
    %v338 = vpop.f32.mrb[0].mxu0
    %339 = vmatprep.mubr.bf16.mxu0 0
    %340 = vmatmul.mubr.bf16.gmra.mrb[0].mxu0 %v213
    %v341 = vpop.f32.mrb[0].mxu0
    %v342 = vadd.f32 %v145, %v341
    %v343 = vpop.f32.mrb[0].mxu0
    %v344 = vpop.f32.mrb[0].mxu0
    %v345 = vadd.f32 %v145, %v344
    %v346 = vpop.f32.mrb[0].mxu0
    %347 = vmatprep.mubr.bf16.mxu0 0
    %348 = vmatmul.mubr.bf16.gmra.mrb[0].mxu0 %v214
    %v349 = vpop.f32.mrb[0].mxu0
    %v350 = vadd.f32 %v145, %v349
    %v351 = vpop.f32.mrb[0].mxu0
    %v352 = vpop.f32.mrb[0].mxu0
    %v353 = vadd.f32 %v145, %v352
    %v354 = vpop.f32.mrb[0].mxu0
    %355 = vmatprep.mubr.bf16.mxu0 0
    %356 = vmatmul.mubr.bf16.gmra.mrb[0].mxu0 %v215
    %v357 = vpop.f32.mrb[0].mxu0
    %v358 = vadd.f32 %v145, %v357
    %v359 = vpop.f32.mrb[0].mxu0
    %v360 = vpop.f32.mrb[0].mxu0
    %v361 = vadd.f32 %v145, %v360
    %v362 = vpop.f32.mrb[0].mxu0
    %363 = vmatprep.mubr.bf16.mxu0 0
    %364 = vmatmul.mubr.bf16.gmra.mrb[0].mxu0 %v216
    %v365 = vpop.f32.mrb[0].mxu0
    %v366 = vadd.f32 %v145, %v365
    %v367 = vpop.f32.mrb[0].mxu0
    %v368 = vpop.f32.mrb[0].mxu0
    %v369 = vadd.f32 %v145, %v368
    %v370 = vpop.f32.mrb[0].mxu0
    %371 = vmatprep.mubr.bf16.mxu0 0
    %372 = vmatmul.mubr.bf16.gmra.mrb[0].mxu0 %v217
    %v373 = vpop.f32.mrb[0].mxu0
    %v374 = vadd.f32 %v145, %v373
    %v375 = vpop.f32.mrb[0].mxu0
    %v376 = vpop.f32.mrb[0].mxu0
    %v377 = vadd.f32 %v145, %v376
    %v378 = vpop.f32.mrb[0].mxu0
    %379 = vmatprep.mubr.bf16.mxu0 0
    %380 = vmatmul.mubr.bf16.gmra.mrb[0].mxu0 %v218
    %v381 = vpop.f32.mrb[0].mxu0
    %v382 = vadd.f32 %v145, %v381
    %v383 = vpop.f32.mrb[0].mxu0
    %v384 = vpop.f32.mrb[0].mxu0
    %v385 = vadd.f32 %v145, %v384
    %v386 = vpop.f32.mrb[0].mxu0
    %387 = vmatprep.mubr.bf16.mxu0 0
    %388 = vmatmul.mubr.bf16.gmra.mrb[0].mxu0 %v219
    %v389 = vpop.f32.mrb[0].mxu0
    %v390 = vadd.f32 %v145, %v389
    %v391 = vpop.f32.mrb[0].mxu0
    %v392 = vpop.f32.mrb[0].mxu0
    %v393 = vadd.f32 %v145, %v392
    %v394 = vpop.f32.mrb[0].mxu0
    %395 = vmatprep.mubr.bf16.mxu0 0
    %396 = vmatmul.mubr.bf16.gmra.mrb[0].mxu0 %v220
    %v397 = vpop.f32.mrb[0].mxu0
    %v398 = vadd.f32 %v145, %v397
    %v399 = vpop.f32.mrb[0].mxu0
    %v400 = vpop.f32.mrb[0].mxu0
    %v401 = vadd.f32 %v145, %v400
    %v402 = vpop.f32.mrb[0].mxu0
    %403 = vmatprep.mubr.bf16.mxu0 0
    %404 = vmatmul.mubr.bf16.gmra.mrb[0].mxu0 %v221
    %v405 = vpop.f32.mrb[0].mxu0
    %v406 = vadd.f32 %v145, %v405
    %v407 = vpop.f32.mrb[0].mxu0
    %v408 = vpop.f32.mrb[0].mxu0
    %v409 = vadd.f32 %v145, %v408
    %v410 = vpop.f32.mrb[0].mxu0
    %411 = vmatprep.mubr.bf16.mxu0 0
    %412 = vmatmul.mubr.bf16.gmra.mrb[0].mxu0 %v222
    %v413 = vpop.f32.mrb[0].mxu0
    %v414 = vadd.f32 %v145, %v413
    %v415 = vpop.f32.mrb[0].mxu0
    %v416 = vpop.f32.mrb[0].mxu0
    %v417 = vadd.f32 %v145, %v416
    %v418 = vpop.f32.mrb[0].mxu0
    %419 = vmatprep.mubr.bf16.mxu0 0
    %420 = vmatmul.mubr.bf16.gmra.mrb[0].mxu0 %v223
    %v421 = vpop.f32.mrb[0].mxu0
    %v422 = vadd.f32 %v145, %v421
    %v423 = vpop.f32.mrb[0].mxu0
    %v424 = vpop.f32.mrb[0].mxu0
    %v425 = vadd.f32 %v145, %v424
    %v426 = vpop.f32.mrb[0].mxu0
    %427 = vmatprep.mubr.bf16.mxu0 0
    %428 = vmatmul.mubr.bf16.gmra.mrb[0].mxu0 %v224
    %v429 = vpop.f32.mrb[0].mxu0
    %v430 = vadd.f32 %v145, %v429
    %v431 = vpop.f32.mrb[0].mxu0
    %v432 = vpop.f32.mrb[0].mxu0
    %v433 = vadd.f32 %v145, %v432
    %v434 = vpop.f32.mrb[0].mxu0
    %435 = vmatprep.mubr.bf16.mxu0 0
    %436 = vmatmul.mubr.bf16.gmra.mrb[0].mxu0 %v225
    %v437 = vpop.f32.mrb[0].mxu0
    %v438 = vadd.f32 %v145, %v437
    %v439 = vpop.f32.mrb[0].mxu0
    %v440 = vpop.f32.mrb[0].mxu0
    %v441 = vadd.f32 %v145, %v440
    %v442 = vpop.f32.mrb[0].mxu0
    %443 = vmatprep.mubr.bf16.mxu0 0
    %444 = vmatmul.mubr.bf16.gmra.mrb[0].mxu0 %v226
    %v445 = vpop.f32.mrb[0].mxu0
    %v446 = vadd.f32 %v145, %v445
    %v447 = vpop.f32.mrb[0].mxu0
    %v448 = vpop.f32.mrb[0].mxu0
    %v449 = vadd.f32 %v145, %v448
    %v450 = vpop.f32.mrb[0].mxu0
    %451 = vdwg.mxu0
    %v452 = vpack.c.bf16 %v329, %v326
    %v453 = vpack.c.bf16 %v337, %v334
    %v454 = vpack.c.bf16 %v345, %v342
    %v455 = vpack.c.bf16 %v353, %v350
    %v456 = vpack.c.bf16 %v361, %v358
    %v457 = vpack.c.bf16 %v369, %v366
    %v458 = vpack.c.bf16 %v377, %v374
    %v459 = vpack.c.bf16 %v385, %v382
    %v460 = vpack.c.bf16 %v393, %v390
    %v461 = vpack.c.bf16 %v401, %v398
    %v462 = vpack.c.bf16 %v409, %v406
    %v463 = vpack.c.bf16 %v417, %v414
    %v464 = vpack.c.bf16 %v425, %v422
    %v465 = vpack.c.bf16 %v433, %v430
    %v466 = vpack.c.bf16 %v441, %v438
    %v467 = vpack.c.bf16 %v449, %v446
    %v468 = vld [vmem:[%s5] sm:$0xf]
    %v469 = vld [vmem:[%s5 + $0x4] sm:$0xf]
    %v470 = vld [vmem:[%s5 + $0x8] sm:$0xf]
    %v471 = vld [vmem:[%s5 + $0xc] sm:$0xf]
    %v472 = vld [vmem:[%s5 + $0x10] sm:$0xf]
    %v473 = vld [vmem:[%s5 + $0x14] sm:$0xf]
    %v474 = vld [vmem:[%s5 + $0x18] sm:$0xf]
    %v475 = vld [vmem:[%s5 + $0x1c] sm:$0xf]
    %v476 = vld [vmem:[%s5 + $0x20] sm:$0xf]
    %v477 = vld [vmem:[%s5 + $0x24] sm:$0xf]
    %v478 = vld [vmem:[%s5 + $0x28] sm:$0xf]
    %v479 = vld [vmem:[%s5 + $0x2c] sm:$0xf]
    %v480 = vld [vmem:[%s5 + $0x30] sm:$0xf]
    %v481 = vld [vmem:[%s5 + $0x34] sm:$0xf]
    %v482 = vld [vmem:[%s5 + $0x38] sm:$0xf]
    %v483 = vld [vmem:[%s5 + $0x3c] sm:$0xf]
    %v484 = vld [vmem:[%s6] sm:$0x1]
    %v486 = vlaneseq
    %v487 = vshrl.u32 %v486, 7
    %v488 = vsub.s32 0, %v487
    %v489 = vrot.slane %v484, %v488
    %v523 = vunpack.c.l.b16 %v92
    %v524 = vunpack.c.l.b16 %v93
    %v525 = vunpack.c.l.b16 %v94
    %v526 = vunpack.c.l.b16 %v95
    %v527 = vunpack.c.l.b16 %v96
    %v528 = vunpack.c.l.b16 %v97
    %v529 = vunpack.c.l.b16 %v98
    %v530 = vunpack.c.l.b16 %v99
    %v531 = vunpack.c.l.b16 %v100
    %v532 = vunpack.c.l.b16 %v101
    %v533 = vunpack.c.l.b16 %v102
    %v534 = vunpack.c.l.b16 %v103
    %v535 = vunpack.c.l.b16 %v104
    %v536 = vunpack.c.l.b16 %v105
    %v537 = vunpack.c.l.b16 %v106
    %v538 = vunpack.c.l.b16 %v107
    %v539 = vunpack.c.l.b16 %v108
    %v540 = vunpack.c.l.b16 %v109
    %v541 = vunpack.c.l.b16 %v110
    %v542 = vunpack.c.l.b16 %v111
    %v543 = vunpack.c.l.b16 %v112
    %v544 = vunpack.c.l.b16 %v113
    %v545 = vunpack.c.l.b16 %v114
    %v546 = vunpack.c.l.b16 %v115
    %v547 = vunpack.c.l.b16 %v116
    %v548 = vunpack.c.l.b16 %v117
    %v549 = vunpack.c.l.b16 %v118
    %v550 = vunpack.c.l.b16 %v119
    %v551 = vunpack.c.l.b16 %v120
    %v552 = vunpack.c.l.b16 %v121
    %v553 = vunpack.c.l.b16 %v122
    %v554 = vunpack.c.l.b16 %v123
    %v555 = vpack.c.b16 %v524, %v523
    %v556 = vpack.c.b16 %v526, %v525
    %v557 = vpack.c.b16 %v528, %v527
    %v558 = vpack.c.b16 %v530, %v529
    %v559 = vpack.c.b16 %v532, %v531
    %v560 = vpack.c.b16 %v534, %v533
    %v561 = vpack.c.b16 %v536, %v535
    %v562 = vpack.c.b16 %v538, %v537
    %v563 = vpack.c.b16 %v540, %v539
    %v564 = vpack.c.b16 %v542, %v541
    %v565 = vpack.c.b16 %v544, %v543
    %v566 = vpack.c.b16 %v546, %v545
    %v567 = vpack.c.b16 %v548, %v547
    %v568 = vpack.c.b16 %v550, %v549
    %v569 = vpack.c.b16 %v552, %v551
    %v570 = vpack.c.b16 %v554, %v553
    %v603 = vunpack.c.l.b16 %v468
    %v604 = vunpack.c.l.b16 %v469
    %v605 = vunpack.c.l.b16 %v470
    %v606 = vunpack.c.l.b16 %v471
    %v607 = vunpack.c.l.b16 %v472
    %v608 = vunpack.c.l.b16 %v473
    %v609 = vunpack.c.l.b16 %v474
    %v610 = vunpack.c.l.b16 %v475
    %v611 = vunpack.c.l.b16 %v476
    %v612 = vunpack.c.l.b16 %v477
    %v613 = vunpack.c.l.b16 %v478
    %v614 = vunpack.c.l.b16 %v479
    %v615 = vunpack.c.l.b16 %v480
    %v616 = vunpack.c.l.b16 %v481
    %v617 = vunpack.c.l.b16 %v482
    %v618 = vunpack.c.l.b16 %v483
    %v619 = vpack.c.b16 %v604, %v603
    %v620 = vpack.c.b16 %v606, %v605
    %v621 = vpack.c.b16 %v608, %v607
    %v622 = vpack.c.b16 %v610, %v609
    %v623 = vpack.c.b16 %v612, %v611
    %v624 = vpack.c.b16 %v614, %v613
    %v625 = vpack.c.b16 %v616, %v615
    %v626 = vpack.c.b16 %v618, %v617
    %635 = vmatprep.subr.bf16.mxu0 0
    %636 = vmatpush1.bf16.msra.mxu0 %v619
    %637 = vmatprep.subr.bf16.mxu0 0
    %638 = vmatpush1.bf16.msra.mxu0 %v620
    %639 = vmatprep.subr.bf16.mxu0 0
    %640 = vmatpush1.bf16.msra.mxu0 %v621
    %641 = vmatprep.subr.bf16.mxu0 0
    %642 = vmatpush1.bf16.msra.mxu0 %v622
    %643 = vmatprep.subr.bf16.mxu0 0
    %644 = vmatpush1.bf16.msra.mxu0 %v623
    %645 = vmatprep.subr.bf16.mxu0 0
    %646 = vmatpush1.bf16.msra.mxu0 %v624
    %647 = vmatprep.subr.bf16.mxu0 0
    %648 = vmatpush1.bf16.msra.mxu0 %v625
    %649 = vmatprep.subr.bf16.mxu0 0
    %650 = vmatpush1.bf16.msra.mxu0 %v626
    %651 = vmatprep.subr.bf16.mxu0 0
    %652 = vmatpush1.bf16.msra.mxu0 0
    %653 = vmatprep.subr.bf16.mxu0 0
    %654 = vmatpush1.bf16.msra.mxu0 0
    %655 = vmatprep.subr.bf16.mxu0 0
    %656 = vmatpush1.bf16.msra.mxu0 0
    %657 = vmatprep.subr.bf16.mxu0 0
    %658 = vmatpush1.bf16.msra.mxu0 0
    %659 = vmatprep.subr.bf16.mxu0 0
    %660 = vmatpush1.bf16.msra.mxu0 0
    %661 = vmatprep.subr.bf16.mxu0 0
    %662 = vmatpush1.bf16.msra.mxu0 0
    %663 = vmatprep.subr.bf16.mxu0 0
    %664 = vmatpush1.bf16.msra.mxu0 0
    %665 = vmatprep.subr.bf16.mxu0 0
    %666 = vmatpush1.bf16.msra.mxu0 0
    %667 = vmatprep.mubr.bf16.mxu0 0
    %668 = vmatmul.mubr.bf16.gmra.mrb[0].mxu0 %v555
    %v669 = vpop.f32.mrb[0].mxu0
    %v670 = vadd.f32 %v489, %v669
    %v671 = vpop.f32.mrb[0].mxu0
    %v672 = vpop.f32.mrb[0].mxu0
    %v673 = vadd.f32 %v489, %v672
    %v674 = vpop.f32.mrb[0].mxu0
    %675 = vmatprep.mubr.bf16.mxu0 0
    %676 = vmatmul.mubr.bf16.gmra.mrb[0].mxu0 %v556
    %v677 = vpop.f32.mrb[0].mxu0
    %v678 = vadd.f32 %v489, %v677
    %v679 = vpop.f32.mrb[0].mxu0
    %v680 = vpop.f32.mrb[0].mxu0
    %v681 = vadd.f32 %v489, %v680
    %v682 = vpop.f32.mrb[0].mxu0
    %683 = vmatprep.mubr.bf16.mxu0 0
    %684 = vmatmul.mubr.bf16.gmra.mrb[0].mxu0 %v557
    %v685 = vpop.f32.mrb[0].mxu0
    %v686 = vadd.f32 %v489, %v685
    %v687 = vpop.f32.mrb[0].mxu0
    %v688 = vpop.f32.mrb[0].mxu0
    %v689 = vadd.f32 %v489, %v688
    %v690 = vpop.f32.mrb[0].mxu0
    %691 = vmatprep.mubr.bf16.mxu0 0
    %692 = vmatmul.mubr.bf16.gmra.mrb[0].mxu0 %v558
    %v693 = vpop.f32.mrb[0].mxu0
    %v694 = vadd.f32 %v489, %v693
    %v695 = vpop.f32.mrb[0].mxu0
    %v696 = vpop.f32.mrb[0].mxu0
    %v697 = vadd.f32 %v489, %v696
    %v698 = vpop.f32.mrb[0].mxu0
    %699 = vmatprep.mubr.bf16.mxu0 0
    %700 = vmatmul.mubr.bf16.gmra.mrb[0].mxu0 %v559
    %v701 = vpop.f32.mrb[0].mxu0
    %v702 = vadd.f32 %v489, %v701
    %v703 = vpop.f32.mrb[0].mxu0
    %v704 = vpop.f32.mrb[0].mxu0
    %v705 = vadd.f32 %v489, %v704
    %v706 = vpop.f32.mrb[0].mxu0
    %707 = vmatprep.mubr.bf16.mxu0 0
    %708 = vmatmul.mubr.bf16.gmra.mrb[0].mxu0 %v560
    %v709 = vpop.f32.mrb[0].mxu0
    %v710 = vadd.f32 %v489, %v709
    %v711 = vpop.f32.mrb[0].mxu0
    %v712 = vpop.f32.mrb[0].mxu0
    %v713 = vadd.f32 %v489, %v712
    %v714 = vpop.f32.mrb[0].mxu0
    %715 = vmatprep.mubr.bf16.mxu0 0
    %716 = vmatmul.mubr.bf16.gmra.mrb[0].mxu0 %v561
    %v717 = vpop.f32.mrb[0].mxu0
    %v718 = vadd.f32 %v489, %v717
    %v719 = vpop.f32.mrb[0].mxu0
    %v720 = vpop.f32.mrb[0].mxu0
    %v721 = vadd.f32 %v489, %v720
    %v722 = vpop.f32.mrb[0].mxu0
    %723 = vmatprep.mubr.bf16.mxu0 0
    %724 = vmatmul.mubr.bf16.gmra.mrb[0].mxu0 %v562
    %v725 = vpop.f32.mrb[0].mxu0
    %v726 = vadd.f32 %v489, %v725
    %v727 = vpop.f32.mrb[0].mxu0
    %v728 = vpop.f32.mrb[0].mxu0
    %v729 = vadd.f32 %v489, %v728
    %v730 = vpop.f32.mrb[0].mxu0
    %731 = vmatprep.mubr.bf16.mxu0 0
    %732 = vmatmul.mubr.bf16.gmra.mrb[0].mxu0 %v563
    %v733 = vpop.f32.mrb[0].mxu0
    %v734 = vadd.f32 %v489, %v733
    %v735 = vpop.f32.mrb[0].mxu0
    %v736 = vpop.f32.mrb[0].mxu0
    %v737 = vadd.f32 %v489, %v736
    %v738 = vpop.f32.mrb[0].mxu0
    %739 = vmatprep.mubr.bf16.mxu0 0
    %740 = vmatmul.mubr.bf16.gmra.mrb[0].mxu0 %v564
    %v741 = vpop.f32.mrb[0].mxu0
    %v742 = vadd.f32 %v489, %v741
    %v743 = vpop.f32.mrb[0].mxu0
    %v744 = vpop.f32.mrb[0].mxu0
    %v745 = vadd.f32 %v489, %v744
    %v746 = vpop.f32.mrb[0].mxu0
    %747 = vmatprep.mubr.bf16.mxu0 0
    %748 = vmatmul.mubr.bf16.gmra.mrb[0].mxu0 %v565
    %v749 = vpop.f32.mrb[0].mxu0
    %v750 = vadd.f32 %v489, %v749
    %v751 = vpop.f32.mrb[0].mxu0
    %v752 = vpop.f32.mrb[0].mxu0
    %v753 = vadd.f32 %v489, %v752
    %v754 = vpop.f32.mrb[0].mxu0
    %755 = vmatprep.mubr.bf16.mxu0 0
    %756 = vmatmul.mubr.bf16.gmra.mrb[0].mxu0 %v566
    %v757 = vpop.f32.mrb[0].mxu0
    %v758 = vadd.f32 %v489, %v757
    %v759 = vpop.f32.mrb[0].mxu0
    %v760 = vpop.f32.mrb[0].mxu0
    %v761 = vadd.f32 %v489, %v760
    %v762 = vpop.f32.mrb[0].mxu0
    %763 = vmatprep.mubr.bf16.mxu0 0
    %764 = vmatmul.mubr.bf16.gmra.mrb[0].mxu0 %v567
    %v765 = vpop.f32.mrb[0].mxu0
    %v766 = vadd.f32 %v489, %v765
    %v767 = vpop.f32.mrb[0].mxu0
    %v768 = vpop.f32.mrb[0].mxu0
    %v769 = vadd.f32 %v489, %v768
    %v770 = vpop.f32.mrb[0].mxu0
    %771 = vmatprep.mubr.bf16.mxu0 0
    %772 = vmatmul.mubr.bf16.gmra.mrb[0].mxu0 %v568
    %v773 = vpop.f32.mrb[0].mxu0
    %v774 = vadd.f32 %v489, %v773
    %v775 = vpop.f32.mrb[0].mxu0
    %v776 = vpop.f32.mrb[0].mxu0
    %v777 = vadd.f32 %v489, %v776
    %v778 = vpop.f32.mrb[0].mxu0
    %779 = vmatprep.mubr.bf16.mxu0 0
    %780 = vmatmul.mubr.bf16.gmra.mrb[0].mxu0 %v569
    %v781 = vpop.f32.mrb[0].mxu0
    %v782 = vadd.f32 %v489, %v781
    %v783 = vpop.f32.mrb[0].mxu0
    %v784 = vpop.f32.mrb[0].mxu0
    %v785 = vadd.f32 %v489, %v784
    %v786 = vpop.f32.mrb[0].mxu0
    %787 = vmatprep.mubr.bf16.mxu0 0
    %788 = vmatmul.mubr.bf16.gmra.mrb[0].mxu0 %v570
    %v789 = vpop.f32.mrb[0].mxu0
    %v790 = vadd.f32 %v489, %v789
    %v791 = vpop.f32.mrb[0].mxu0
    %v792 = vpop.f32.mrb[0].mxu0
    %v793 = vadd.f32 %v489, %v792
    %v794 = vpop.f32.mrb[0].mxu0
    %795 = vdwg.mxu0
    %v796 = vpack.c.bf16 %v673, %v670
    %v797 = vpack.c.bf16 %v681, %v678
    %v798 = vpack.c.bf16 %v689, %v686
    %v799 = vpack.c.bf16 %v697, %v694
    %v800 = vpack.c.bf16 %v705, %v702
    %v801 = vpack.c.bf16 %v713, %v710
    %v802 = vpack.c.bf16 %v721, %v718
    %v803 = vpack.c.bf16 %v729, %v726
    %v804 = vpack.c.bf16 %v737, %v734
    %v805 = vpack.c.bf16 %v745, %v742
    %v806 = vpack.c.bf16 %v753, %v750
    %v807 = vpack.c.bf16 %v761, %v758
    %v808 = vpack.c.bf16 %v769, %v766
    %v809 = vpack.c.bf16 %v777, %v774
    %v810 = vpack.c.bf16 %v785, %v782
    %v811 = vpack.c.bf16 %v793, %v790
    %v812 = vpack.c.bf16 %v58, %v58
    %v813 = vpack.c.bf16 %v59, %v59
    %814 = vmatprep.subr.bf16.mxu0 0
    %815 = vmatpush1.bf16.xpose.msra.mxu0 %v452
    %816 = vmatprep.subr.bf16.mxu0 0
    %817 = vmatpush1.bf16.xpose.msra.mxu0 %v453
    %818 = vmatprep.subr.bf16.mxu0 0
    %819 = vmatpush1.bf16.xpose.msra.mxu0 %v454
    %820 = vmatprep.subr.bf16.mxu0 0
    %821 = vmatpush1.bf16.xpose.msra.mxu0 %v455
    %822 = vmatprep.subr.bf16.mxu0 0
    %823 = vmatpush1.bf16.xpose.msra.mxu0 %v456
    %824 = vmatprep.subr.bf16.mxu0 0
    %825 = vmatpush1.bf16.xpose.msra.mxu0 %v457
    %826 = vmatprep.subr.bf16.mxu0 0
    %827 = vmatpush1.bf16.xpose.msra.mxu0 %v458
    %828 = vmatprep.subr.bf16.mxu0 0
    %829 = vmatpush1.bf16.xpose.msra.mxu0 %v459
    %830 = vmatprep.subr.bf16.mxu0 0
    %831 = vmatpush1.bf16.xpose.msra.mxu0 0
    %832 = vmatprep.subr.bf16.mxu0 0
    %833 = vmatpush1.bf16.xpose.msra.mxu0 0
    %834 = vmatprep.subr.bf16.mxu0 0
    %835 = vmatpush1.bf16.xpose.msra.mxu0 0
    %836 = vmatprep.subr.bf16.mxu0 0
    %837 = vmatpush1.bf16.xpose.msra.mxu0 0
    %838 = vmatprep.subr.bf16.mxu0 0
    %839 = vmatpush1.bf16.xpose.msra.mxu0 0
    %840 = vmatprep.subr.bf16.mxu0 0
    %841 = vmatpush1.bf16.xpose.msra.mxu0 0
    %842 = vmatprep.subr.bf16.mxu0 0
    %843 = vmatpush1.bf16.xpose.msra.mxu0 0
    %844 = vmatprep.subr.bf16.mxu0 0
    %845 = vmatpush1.bf16.xpose.msra.mxu0 0
    %846 = vmatprep.mubr.bf16.mxu0 0
    %847 = vmatmul.mubr.bf16.gmra.mrb[0].mxu0 %v812
    %v848 = vpop.f32.mrb[0].mxu0
    %v849 = vadd.f32 0.0, %v848
    %v850 = vpop.f32.mrb[0].mxu0
    %v851 = vpop.f32.mrb[0].mxu0
    %v852 = vpop.f32.mrb[0].mxu0
    %853 = vdwg.mxu0
    %854 = vmatprep.subr.bf16.mxu0 0
    %855 = vmatpush1.bf16.xpose.msra.mxu0 %v460
    %856 = vmatprep.subr.bf16.mxu0 0
    %857 = vmatpush1.bf16.xpose.msra.mxu0 %v461
    %858 = vmatprep.subr.bf16.mxu0 0
    %859 = vmatpush1.bf16.xpose.msra.mxu0 %v462
    %860 = vmatprep.subr.bf16.mxu0 0
    %861 = vmatpush1.bf16.xpose.msra.mxu0 %v463
    %862 = vmatprep.subr.bf16.mxu0 0
    %863 = vmatpush1.bf16.xpose.msra.mxu0 %v464
    %864 = vmatprep.subr.bf16.mxu0 0
    %865 = vmatpush1.bf16.xpose.msra.mxu0 %v465
    %866 = vmatprep.subr.bf16.mxu0 0
    %867 = vmatpush1.bf16.xpose.msra.mxu0 %v466
    %868 = vmatprep.subr.bf16.mxu0 0
    %869 = vmatpush1.bf16.xpose.msra.mxu0 %v467
    %870 = vmatprep.subr.bf16.mxu0 0
    %871 = vmatpush1.bf16.xpose.msra.mxu0 0
    %872 = vmatprep.subr.bf16.mxu0 0
    %873 = vmatpush1.bf16.xpose.msra.mxu0 0
    %874 = vmatprep.subr.bf16.mxu0 0
    %875 = vmatpush1.bf16.xpose.msra.mxu0 0
    %876 = vmatprep.subr.bf16.mxu0 0
    %877 = vmatpush1.bf16.xpose.msra.mxu0 0
    %878 = vmatprep.subr.bf16.mxu0 0
    %879 = vmatpush1.bf16.xpose.msra.mxu0 0
    %880 = vmatprep.subr.bf16.mxu0 0
    %881 = vmatpush1.bf16.xpose.msra.mxu0 0
    %882 = vmatprep.subr.bf16.mxu0 0
    %883 = vmatpush1.bf16.xpose.msra.mxu0 0
    %884 = vmatprep.subr.bf16.mxu0 0
    %885 = vmatpush1.bf16.xpose.msra.mxu0 0
    %886 = vmatprep.mubr.bf16.mxu0 0
    %887 = vmatmul.mubr.bf16.gmra.mrb[0].mxu0 %v813
    %v888 = vpop.f32.mrb[0].mxu0
    %v889 = vadd.f32 0.0, %v888
    %v890 = vpop.f32.mrb[0].mxu0
    %v891 = vpop.f32.mrb[0].mxu0
    %v892 = vpop.f32.mrb[0].mxu0
    %893 = vdwg.mxu0
    %v894 = vlaneseq
    %v895 = vand.u32 %v894, 127
    %vm896 = vcmp.lt.s32.totalorder %v895, 8
    %v897 = vsel %vm896, %v849, -1e+30
    %v898 = vsel %vm896, %v889, -1e+30
    %899 = vmax.xlane.f32.xlu0 %v897
    %v900 = vpop.xlane.xlu0 %899
    %901 = vmax.xlane.f32.xlu0 %v898
    %v902 = vpop.xlane.xlu0 %901
    %v903 = vsub.f32 %v897, %v900
    %v904 = vsub.f32 %v898, %v902
    %v905 = vmul.f32 %v903, 1.442695
    %v906 = vpow.pop %v905
    %v907 = vmul.f32 %v904, 1.442695
    %v908 = vpow.pop %v907
    %909 = vadd.xlane.f32.xlu0 %v906
    %v910 = vpop.xlane.xlu0 %909
    %911 = vadd.xlane.f32.xlu0 %v908
    %v912 = vpop.xlane.xlu0 %911
    %v913 = vrcp.pop %v910
    %v914 = vrcp.pop %v912
    %v915 = vmul.f32 %v906, %v913
    %v916 = vmul.f32 %v908, %v914
    %v917 = vpack.c.bf16 %v915, %v915
    %v918 = vpack.c.bf16 %v916, %v916
    %919 = vmatprep.subr.bf16.mxu0 0
    %920 = vmatpush1.bf16.msra.mxu0 %v796
    %921 = vmatprep.subr.bf16.mxu0 0
    %922 = vmatpush1.bf16.msra.mxu0 %v797
    %923 = vmatprep.subr.bf16.mxu0 0
    %924 = vmatpush1.bf16.msra.mxu0 %v798
    %925 = vmatprep.subr.bf16.mxu0 0
    %926 = vmatpush1.bf16.msra.mxu0 %v799
    %927 = vmatprep.subr.bf16.mxu0 0
    %928 = vmatpush1.bf16.msra.mxu0 %v800
    %929 = vmatprep.subr.bf16.mxu0 0
    %930 = vmatpush1.bf16.msra.mxu0 %v801
    %931 = vmatprep.subr.bf16.mxu0 0
    %932 = vmatpush1.bf16.msra.mxu0 %v802
    %933 = vmatprep.subr.bf16.mxu0 0
    %934 = vmatpush1.bf16.msra.mxu0 %v803
    %935 = vmatprep.subr.bf16.mxu0 0
    %936 = vmatpush1.bf16.msra.mxu0 0
    %937 = vmatprep.subr.bf16.mxu0 0
    %938 = vmatpush1.bf16.msra.mxu0 0
    %939 = vmatprep.subr.bf16.mxu0 0
    %940 = vmatpush1.bf16.msra.mxu0 0
    %941 = vmatprep.subr.bf16.mxu0 0
    %942 = vmatpush1.bf16.msra.mxu0 0
    %943 = vmatprep.subr.bf16.mxu0 0
    %944 = vmatpush1.bf16.msra.mxu0 0
    %945 = vmatprep.subr.bf16.mxu0 0
    %946 = vmatpush1.bf16.msra.mxu0 0
    %947 = vmatprep.subr.bf16.mxu0 0
    %948 = vmatpush1.bf16.msra.mxu0 0
    %949 = vmatprep.subr.bf16.mxu0 0
    %950 = vmatpush1.bf16.msra.mxu0 0
    %951 = vmatprep.mubr.bf16.mxu0 0
    %952 = vmatmul.mubr.bf16.gmra.mrb[0].mxu0 %v917
    %v953 = vpop.f32.mrb[0].mxu0
    %v954 = vadd.f32 0.0, %v953
    %v955 = vpop.f32.mrb[0].mxu0
    %v956 = vpop.f32.mrb[0].mxu0
    %v957 = vpop.f32.mrb[0].mxu0
    %958 = vdwg.mxu0
    %959 = vmatprep.subr.bf16.mxu0 0
    %960 = vmatpush1.bf16.msra.mxu0 %v804
    %961 = vmatprep.subr.bf16.mxu0 0
    %962 = vmatpush1.bf16.msra.mxu0 %v805
    %963 = vmatprep.subr.bf16.mxu0 0
    %964 = vmatpush1.bf16.msra.mxu0 %v806
    %965 = vmatprep.subr.bf16.mxu0 0
    %966 = vmatpush1.bf16.msra.mxu0 %v807
    %967 = vmatprep.subr.bf16.mxu0 0
    %968 = vmatpush1.bf16.msra.mxu0 %v808
    %969 = vmatprep.subr.bf16.mxu0 0
    %970 = vmatpush1.bf16.msra.mxu0 %v809
    %971 = vmatprep.subr.bf16.mxu0 0
    %972 = vmatpush1.bf16.msra.mxu0 %v810
    %973 = vmatprep.subr.bf16.mxu0 0
    %974 = vmatpush1.bf16.msra.mxu0 %v811
    %975 = vmatprep.subr.bf16.mxu0 0
    %976 = vmatpush1.bf16.msra.mxu0 0
    %977 = vmatprep.subr.bf16.mxu0 0
    %978 = vmatpush1.bf16.msra.mxu0 0
    %979 = vmatprep.subr.bf16.mxu0 0
    %980 = vmatpush1.bf16.msra.mxu0 0
    %981 = vmatprep.subr.bf16.mxu0 0
    %982 = vmatpush1.bf16.msra.mxu0 0
    %983 = vmatprep.subr.bf16.mxu0 0
    %984 = vmatpush1.bf16.msra.mxu0 0
    %985 = vmatprep.subr.bf16.mxu0 0
    %986 = vmatpush1.bf16.msra.mxu0 0
    %987 = vmatprep.subr.bf16.mxu0 0
    %988 = vmatpush1.bf16.msra.mxu0 0
    %989 = vmatprep.subr.bf16.mxu0 0
    %990 = vmatpush1.bf16.msra.mxu0 0
    %991 = vmatprep.mubr.bf16.mxu0 0
    %992 = vmatmul.mubr.bf16.gmra.mrb[0].mxu0 %v918
    %v993 = vpop.f32.mrb[0].mxu0
    %v994 = vadd.f32 0.0, %v993
    %v995 = vpop.f32.mrb[0].mxu0
    %v996 = vpop.f32.mrb[0].mxu0
    %v997 = vpop.f32.mrb[0].mxu0
    %998 = vdwg.mxu0
    %v999 = vpack.c.bf16 %v994, %v954
    %v1000 = vld [vmem:[%s7] sm:$0xf]
    %v1001 = vld [vmem:[%s7 + $0x4] sm:$0xf]
    %v1002 = vld [vmem:[%s7 + $0x8] sm:$0xf]
    %v1003 = vld [vmem:[%s7 + $0xc] sm:$0xf]
    %v1004 = vld [vmem:[%s7 + $0x10] sm:$0xf]
    %v1005 = vld [vmem:[%s7 + $0x14] sm:$0xf]
    %v1006 = vld [vmem:[%s7 + $0x18] sm:$0xf]
    %v1007 = vld [vmem:[%s7 + $0x1c] sm:$0xf]
    %v1008 = vld [vmem:[%s7 + $0x20] sm:$0xf]
    %v1009 = vld [vmem:[%s7 + $0x24] sm:$0xf]
    %v1010 = vld [vmem:[%s7 + $0x28] sm:$0xf]
    %v1011 = vld [vmem:[%s7 + $0x2c] sm:$0xf]
    %v1012 = vld [vmem:[%s7 + $0x30] sm:$0xf]
    %v1013 = vld [vmem:[%s7 + $0x34] sm:$0xf]
    %v1014 = vld [vmem:[%s7 + $0x38] sm:$0xf]
    %v1015 = vld [vmem:[%s7 + $0x3c] sm:$0xf]
    %v1016 = vld [vmem:[%s8] sm:$0x1]
    %v1018 = vlaneseq
    %v1019 = vshrl.u32 %v1018, 7
    %v1020 = vsub.s32 0, %v1019
    %v1021 = vrot.slane %v1016, %v1020
    %v1039 = vunpack.c.l.b16 %v1000
    %v1040 = vunpack.c.l.b16 %v1001
    %v1041 = vunpack.c.l.b16 %v1002
    %v1042 = vunpack.c.l.b16 %v1003
    %v1043 = vunpack.c.l.b16 %v1004
    %v1044 = vunpack.c.l.b16 %v1005
    %v1045 = vunpack.c.l.b16 %v1006
    %v1046 = vunpack.c.l.b16 %v1007
    %v1047 = vunpack.c.l.b16 %v1008
    %v1048 = vunpack.c.l.b16 %v1009
    %v1049 = vunpack.c.l.b16 %v1010
    %v1050 = vunpack.c.l.b16 %v1011
    %v1051 = vunpack.c.l.b16 %v1012
    %v1052 = vunpack.c.l.b16 %v1013
    %v1053 = vunpack.c.l.b16 %v1014
    %v1054 = vunpack.c.l.b16 %v1015
    %v1055 = vpack.c.b16 %v1040, %v1039
    %v1056 = vpack.c.b16 %v1042, %v1041
    %v1057 = vpack.c.b16 %v1044, %v1043
    %v1058 = vpack.c.b16 %v1046, %v1045
    %v1059 = vpack.c.b16 %v1048, %v1047
    %v1060 = vpack.c.b16 %v1050, %v1049
    %v1061 = vpack.c.b16 %v1052, %v1051
    %v1062 = vpack.c.b16 %v1054, %v1053
    %1071 = vmatprep.subr.bf16.mxu0 0
    %1072 = vmatpush1.bf16.msra.mxu0 %v1055
    %1073 = vmatprep.subr.bf16.mxu0 0
    %1074 = vmatpush1.bf16.msra.mxu0 %v1056
    %1075 = vmatprep.subr.bf16.mxu0 0
    %1076 = vmatpush1.bf16.msra.mxu0 %v1057
    %1077 = vmatprep.subr.bf16.mxu0 0
    %1078 = vmatpush1.bf16.msra.mxu0 %v1058
    %1079 = vmatprep.subr.bf16.mxu0 0
    %1080 = vmatpush1.bf16.msra.mxu0 %v1059
    %1081 = vmatprep.subr.bf16.mxu0 0
    %1082 = vmatpush1.bf16.msra.mxu0 %v1060
    %1083 = vmatprep.subr.bf16.mxu0 0
    %1084 = vmatpush1.bf16.msra.mxu0 %v1061
    %1085 = vmatprep.subr.bf16.mxu0 0
    %1086 = vmatpush1.bf16.msra.mxu0 %v1062
    %1087 = vmatprep.subr.bf16.mxu0 0
    %1088 = vmatpush1.bf16.msra.mxu0 0
    %1089 = vmatprep.subr.bf16.mxu0 0
    %1090 = vmatpush1.bf16.msra.mxu0 0
    %1091 = vmatprep.subr.bf16.mxu0 0
    %1092 = vmatpush1.bf16.msra.mxu0 0
    %1093 = vmatprep.subr.bf16.mxu0 0
    %1094 = vmatpush1.bf16.msra.mxu0 0
    %1095 = vmatprep.subr.bf16.mxu0 0
    %1096 = vmatpush1.bf16.msra.mxu0 0
    %1097 = vmatprep.subr.bf16.mxu0 0
    %1098 = vmatpush1.bf16.msra.mxu0 0
    %1099 = vmatprep.subr.bf16.mxu0 0
    %1100 = vmatpush1.bf16.msra.mxu0 0
    %1101 = vmatprep.subr.bf16.mxu0 0
    %1102 = vmatpush1.bf16.msra.mxu0 0
    %1103 = vmatprep.mubr.bf16.mxu0 0
    %1104 = vmatmul.mubr.bf16.gmra.mrb[0].mxu0 %v999
    %v1105 = vpop.f32.mrb[0].mxu0
    %v1106 = vadd.f32 %v1021, %v1105
    %v1107 = vpop.f32.mrb[0].mxu0
    %v1108 = vpop.f32.mrb[0].mxu0
    %v1109 = vadd.f32 %v1021, %v1108
    %v1110 = vpop.f32.mrb[0].mxu0
    %1111 = vdwg.mxu0
    %v1112 = vadd.f32 %v58, %v1106
    %v1113 = vadd.f32 %v59, %v1109
    %v1114 = vld [vmem:[%s9] sm:$0x1]
    %v1115 = vld [vmem:[%s10] sm:$0x1]
    %1116 = vadd.xlane.f32.xlu0 %v1112
    %v1117 = vpop.xlane.xlu0 %1116
    %1118 = vadd.xlane.f32.xlu0 %v1113
    %v1119 = vpop.xlane.xlu0 %1118
    %v1120 = vmul.f32 %v1117, 0.03125
    %v1121 = vmul.f32 %v1119, 0.03125
    %v1122 = vmul.f32 %v1112, %v1112
    %v1123 = vmul.f32 %v1113, %v1113
    %1124 = vadd.xlane.f32.xlu0 %v1122
    %v1125 = vpop.xlane.xlu0 %1124
    %1126 = vadd.xlane.f32.xlu0 %v1123
    %v1127 = vpop.xlane.xlu0 %1126
    %v1128 = vmul.f32 %v1125, 0.03125
    %v1129 = vmul.f32 %v1127, 0.03125
    %v1130 = vmul.f32 %v1120, %v1120
    %v1131 = vmul.f32 %v1121, %v1121
    %v1132 = vsub.f32 %v1128, %v1130
    %v1133 = vsub.f32 %v1129, %v1131
    %v1134 = vmax.f32 %v1132, 0.0
    %v1135 = vmax.f32 %v1133, 0.0
    %v1136 = vadd.f32 %v1134, 1e-05
    %v1137 = vadd.f32 %v1135, 1e-05
    %v1138 = vrsqrt.pop %v1136
    %v1139 = vrsqrt.pop %v1137
    %v1140 = vsub.f32 %v1112, %v1120
    %v1141 = vsub.f32 %v1113, %v1121
    %v1142 = vmul.f32 %v1140, %v1138
    %v1143 = vmul.f32 %v1141, %v1139
    %v1145 = vlaneseq
    %v1146 = vshrl.u32 %v1145, 7
    %v1147 = vsub.s32 0, %v1146
    %v1148 = vrot.slane %v1114, %v1147
    %v1150 = vmul.f32 %v1142, %v1148
    %v1151 = vmul.f32 %v1143, %v1148
    %v1153 = vlaneseq
    %v1154 = vshrl.u32 %v1153, 7
    %v1155 = vsub.s32 0, %v1154
    %v1156 = vrot.slane %v1115, %v1155
    %v1158 = vadd.f32 %v1150, %v1156
    %v1159 = vadd.f32 %v1151, %v1156
    %v1160 = vpack.c.bf16 %v1159, %v1158
    %v1161 = vld [vmem:[%s11] sm:$0xf]
    %v1162 = vld [vmem:[%s11 + $0x4] sm:$0xf]
    %v1163 = vld [vmem:[%s11 + $0x8] sm:$0xf]
    %v1164 = vld [vmem:[%s11 + $0xc] sm:$0xf]
    %v1165 = vld [vmem:[%s11 + $0x10] sm:$0xf]
    %v1166 = vld [vmem:[%s11 + $0x14] sm:$0xf]
    %v1167 = vld [vmem:[%s11 + $0x18] sm:$0xf]
    %v1168 = vld [vmem:[%s11 + $0x1c] sm:$0xf]
    %v1169 = vld [vmem:[%s11 + $0x20] sm:$0xf]
    %v1170 = vld [vmem:[%s11 + $0x24] sm:$0xf]
    %v1171 = vld [vmem:[%s11 + $0x28] sm:$0xf]
    %v1172 = vld [vmem:[%s11 + $0x2c] sm:$0xf]
    %v1173 = vld [vmem:[%s11 + $0x30] sm:$0xf]
    %v1174 = vld [vmem:[%s11 + $0x34] sm:$0xf]
    %v1175 = vld [vmem:[%s11 + $0x38] sm:$0xf]
    %v1176 = vld [vmem:[%s11 + $0x3c] sm:$0xf]
    %v1177 = vld [vmem:[%s12] sm:$0x1]
    %v1179 = vlaneseq
    %v1180 = vshrl.u32 %v1179, 7
    %v1181 = vsub.s32 0, %v1180
    %v1182 = vrot.slane %v1177, %v1181
    %v1200 = vunpack.c.l.b16 %v1161
    %v1201 = vunpack.c.l.b16 %v1162
    %v1202 = vunpack.c.l.b16 %v1163
    %v1203 = vunpack.c.l.b16 %v1164
    %v1204 = vunpack.c.l.b16 %v1165
    %v1205 = vunpack.c.l.b16 %v1166
    %v1206 = vunpack.c.l.b16 %v1167
    %v1207 = vunpack.c.l.b16 %v1168
    %v1208 = vunpack.c.l.b16 %v1169
    %v1209 = vunpack.c.l.b16 %v1170
    %v1210 = vunpack.c.l.b16 %v1171
    %v1211 = vunpack.c.l.b16 %v1172
    %v1212 = vunpack.c.l.b16 %v1173
    %v1213 = vunpack.c.l.b16 %v1174
    %v1214 = vunpack.c.l.b16 %v1175
    %v1215 = vunpack.c.l.b16 %v1176
    %v1216 = vpack.c.b16 %v1201, %v1200
    %v1217 = vpack.c.b16 %v1203, %v1202
    %v1218 = vpack.c.b16 %v1205, %v1204
    %v1219 = vpack.c.b16 %v1207, %v1206
    %v1220 = vpack.c.b16 %v1209, %v1208
    %v1221 = vpack.c.b16 %v1211, %v1210
    %v1222 = vpack.c.b16 %v1213, %v1212
    %v1223 = vpack.c.b16 %v1215, %v1214
    %1232 = vmatprep.subr.bf16.mxu0 0
    %1233 = vmatpush1.bf16.msra.mxu0 %v1216
    %1234 = vmatprep.subr.bf16.mxu0 0
    %1235 = vmatpush1.bf16.msra.mxu0 %v1217
    %1236 = vmatprep.subr.bf16.mxu0 0
    %1237 = vmatpush1.bf16.msra.mxu0 %v1218
    %1238 = vmatprep.subr.bf16.mxu0 0
    %1239 = vmatpush1.bf16.msra.mxu0 %v1219
    %1240 = vmatprep.subr.bf16.mxu0 0
    %1241 = vmatpush1.bf16.msra.mxu0 %v1220
    %1242 = vmatprep.subr.bf16.mxu0 0
    %1243 = vmatpush1.bf16.msra.mxu0 %v1221
    %1244 = vmatprep.subr.bf16.mxu0 0
    %1245 = vmatpush1.bf16.msra.mxu0 %v1222
    %1246 = vmatprep.subr.bf16.mxu0 0
    %1247 = vmatpush1.bf16.msra.mxu0 %v1223
    %1248 = vmatprep.subr.bf16.mxu0 0
    %1249 = vmatpush1.bf16.msra.mxu0 0
    %1250 = vmatprep.subr.bf16.mxu0 0
    %1251 = vmatpush1.bf16.msra.mxu0 0
    %1252 = vmatprep.subr.bf16.mxu0 0
    %1253 = vmatpush1.bf16.msra.mxu0 0
    %1254 = vmatprep.subr.bf16.mxu0 0
    %1255 = vmatpush1.bf16.msra.mxu0 0
    %1256 = vmatprep.subr.bf16.mxu0 0
    %1257 = vmatpush1.bf16.msra.mxu0 0
    %1258 = vmatprep.subr.bf16.mxu0 0
    %1259 = vmatpush1.bf16.msra.mxu0 0
    %1260 = vmatprep.subr.bf16.mxu0 0
    %1261 = vmatpush1.bf16.msra.mxu0 0
    %1262 = vmatprep.subr.bf16.mxu0 0
    %1263 = vmatpush1.bf16.msra.mxu0 0
    %1264 = vmatprep.mubr.bf16.mxu0 0
    %1265 = vmatmul.mubr.bf16.gmra.mrb[0].mxu0 %v1160
    %v1266 = vpop.f32.mrb[0].mxu0
    %v1267 = vadd.f32 %v1182, %v1266
    %v1268 = vpop.f32.mrb[0].mxu0
    %v1269 = vpop.f32.mrb[0].mxu0
    %v1270 = vadd.f32 %v1182, %v1269
    %v1271 = vpop.f32.mrb[0].mxu0
    %1272 = vdwg.mxu0
    %v1273 = vmax.f32 %v1267, 0.0
    %v1274 = vmax.f32 %v1270, 0.0
    %v1275 = vpack.c.bf16 %v1274, %v1273
    %v1276 = vld [vmem:[%s13] sm:$0xf]
    %v1277 = vld [vmem:[%s13 + $0x4] sm:$0xf]
    %v1278 = vld [vmem:[%s13 + $0x8] sm:$0xf]
    %v1279 = vld [vmem:[%s13 + $0xc] sm:$0xf]
    %v1280 = vld [vmem:[%s13 + $0x10] sm:$0xf]
    %v1281 = vld [vmem:[%s13 + $0x14] sm:$0xf]
    %v1282 = vld [vmem:[%s13 + $0x18] sm:$0xf]
    %v1283 = vld [vmem:[%s13 + $0x1c] sm:$0xf]
    %v1284 = vld [vmem:[%s13 + $0x20] sm:$0xf]
    %v1285 = vld [vmem:[%s13 + $0x24] sm:$0xf]
    %v1286 = vld [vmem:[%s13 + $0x28] sm:$0xf]
    %v1287 = vld [vmem:[%s13 + $0x2c] sm:$0xf]
    %v1288 = vld [vmem:[%s13 + $0x30] sm:$0xf]
    %v1289 = vld [vmem:[%s13 + $0x34] sm:$0xf]
    %v1290 = vld [vmem:[%s13 + $0x38] sm:$0xf]
    %v1291 = vld [vmem:[%s13 + $0x3c] sm:$0xf]
    %v1292 = vld [vmem:[%s14] sm:$0x1]
    %v1294 = vlaneseq
    %v1295 = vshrl.u32 %v1294, 7
    %v1296 = vsub.s32 0, %v1295
    %v1297 = vrot.slane %v1292, %v1296
    %v1315 = vunpack.c.l.b16 %v1276
    %v1316 = vunpack.c.l.b16 %v1277
    %v1317 = vunpack.c.l.b16 %v1278
    %v1318 = vunpack.c.l.b16 %v1279
    %v1319 = vunpack.c.l.b16 %v1280
    %v1320 = vunpack.c.l.b16 %v1281
    %v1321 = vunpack.c.l.b16 %v1282
    %v1322 = vunpack.c.l.b16 %v1283
    %v1323 = vunpack.c.l.b16 %v1284
    %v1324 = vunpack.c.l.b16 %v1285
    %v1325 = vunpack.c.l.b16 %v1286
    %v1326 = vunpack.c.l.b16 %v1287
    %v1327 = vunpack.c.l.b16 %v1288
    %v1328 = vunpack.c.l.b16 %v1289
    %v1329 = vunpack.c.l.b16 %v1290
    %v1330 = vunpack.c.l.b16 %v1291
    %v1331 = vpack.c.b16 %v1316, %v1315
    %v1332 = vpack.c.b16 %v1318, %v1317
    %v1333 = vpack.c.b16 %v1320, %v1319
    %v1334 = vpack.c.b16 %v1322, %v1321
    %v1335 = vpack.c.b16 %v1324, %v1323
    %v1336 = vpack.c.b16 %v1326, %v1325
    %v1337 = vpack.c.b16 %v1328, %v1327
    %v1338 = vpack.c.b16 %v1330, %v1329
    %1347 = vmatprep.subr.bf16.mxu0 0
    %1348 = vmatpush1.bf16.msra.mxu0 %v1331
    %1349 = vmatprep.subr.bf16.mxu0 0
    %1350 = vmatpush1.bf16.msra.mxu0 %v1332
    %1351 = vmatprep.subr.bf16.mxu0 0
    %1352 = vmatpush1.bf16.msra.mxu0 %v1333
    %1353 = vmatprep.subr.bf16.mxu0 0
    %1354 = vmatpush1.bf16.msra.mxu0 %v1334
    %1355 = vmatprep.subr.bf16.mxu0 0
    %1356 = vmatpush1.bf16.msra.mxu0 %v1335
    %1357 = vmatprep.subr.bf16.mxu0 0
    %1358 = vmatpush1.bf16.msra.mxu0 %v1336
    %1359 = vmatprep.subr.bf16.mxu0 0
    %1360 = vmatpush1.bf16.msra.mxu0 %v1337
    %1361 = vmatprep.subr.bf16.mxu0 0
    %1362 = vmatpush1.bf16.msra.mxu0 %v1338
    %1363 = vmatprep.subr.bf16.mxu0 0
    %1364 = vmatpush1.bf16.msra.mxu0 0
    %1365 = vmatprep.subr.bf16.mxu0 0
    %1366 = vmatpush1.bf16.msra.mxu0 0
    %1367 = vmatprep.subr.bf16.mxu0 0
    %1368 = vmatpush1.bf16.msra.mxu0 0
    %1369 = vmatprep.subr.bf16.mxu0 0
    %1370 = vmatpush1.bf16.msra.mxu0 0
    %1371 = vmatprep.subr.bf16.mxu0 0
    %1372 = vmatpush1.bf16.msra.mxu0 0
    %1373 = vmatprep.subr.bf16.mxu0 0
    %1374 = vmatpush1.bf16.msra.mxu0 0
    %1375 = vmatprep.subr.bf16.mxu0 0
    %1376 = vmatpush1.bf16.msra.mxu0 0
    %1377 = vmatprep.subr.bf16.mxu0 0
    %1378 = vmatpush1.bf16.msra.mxu0 0
    %1379 = vmatprep.mubr.bf16.mxu0 0
    %1380 = vmatmul.mubr.bf16.gmra.mrb[0].mxu0 %v1275
    %v1381 = vpop.f32.mrb[0].mxu0
    %v1382 = vadd.f32 %v1297, %v1381
    %v1383 = vpop.f32.mrb[0].mxu0
    %v1384 = vpop.f32.mrb[0].mxu0
    %v1385 = vadd.f32 %v1297, %v1384
    %v1386 = vpop.f32.mrb[0].mxu0
    %1387 = vdwg.mxu0
    %v1388 = vadd.f32 %v1158, %v1382
    %v1389 = vadd.f32 %v1159, %v1385
    %v1390 = vld [vmem:[%s15] sm:$0x1]
    %v1391 = vld [vmem:[%s16] sm:$0x1]
    %1392 = vadd.xlane.f32.xlu0 %v1388
    %v1393 = vpop.xlane.xlu0 %1392
    %1394 = vadd.xlane.f32.xlu0 %v1389
    %v1395 = vpop.xlane.xlu0 %1394
    %v1396 = vmul.f32 %v1393, 0.03125
    %v1397 = vmul.f32 %v1395, 0.03125
    %v1398 = vmul.f32 %v1388, %v1388
    %v1399 = vmul.f32 %v1389, %v1389
    %1400 = vadd.xlane.f32.xlu0 %v1398
    %v1401 = vpop.xlane.xlu0 %1400
    %1402 = vadd.xlane.f32.xlu0 %v1399
    %v1403 = vpop.xlane.xlu0 %1402
    %v1404 = vmul.f32 %v1401, 0.03125
    %v1405 = vmul.f32 %v1403, 0.03125
    %v1406 = vmul.f32 %v1396, %v1396
    %v1407 = vmul.f32 %v1397, %v1397
    %v1408 = vsub.f32 %v1404, %v1406
    %v1409 = vsub.f32 %v1405, %v1407
    %v1410 = vmax.f32 %v1408, 0.0
    %v1411 = vmax.f32 %v1409, 0.0
    %v1412 = vadd.f32 %v1410, 1e-05
    %v1413 = vadd.f32 %v1411, 1e-05
    %v1414 = vrsqrt.pop %v1412
    %v1415 = vrsqrt.pop %v1413
    %v1416 = vsub.f32 %v1388, %v1396
    %v1417 = vsub.f32 %v1389, %v1397
    %v1418 = vmul.f32 %v1416, %v1414
    %v1419 = vmul.f32 %v1417, %v1415
    %v1421 = vlaneseq
    %v1422 = vshrl.u32 %v1421, 7
    %v1423 = vsub.s32 0, %v1422
    %v1424 = vrot.slane %v1390, %v1423
    %v1426 = vmul.f32 %v1418, %v1424
    %v1427 = vmul.f32 %v1419, %v1424
    %v1429 = vlaneseq
    %v1430 = vshrl.u32 %v1429, 7
    %v1431 = vsub.s32 0, %v1430
    %v1432 = vrot.slane %v1391, %v1431
    %v1434 = vadd.f32 %v1426, %v1432
    %v1435 = vadd.f32 %v1427, %v1432
    %1436 = vst [vmem:[#allocation2] sm:$0xff] %v1434
    %1437 = vst [vmem:[#allocation2 + $0x8] sm:$0xff] %v1435
    // Predicated region
    $region70: #{funicross.1} parent=1 // pred_check
      _
    $region71: #{funicross.1} parent=1 // pred_check_branch
      %1439 = sbr.rel (0) target = $region73
    $region72: #{funicross.1} parent=1 // pred_region
      %s1441 = ssub.s32 256, 256
      %1442 = vsyncadd [#allocation3], %s1441
      %s1443 = sshll.u32 [#allocation2], 4
      %s1444 = int_to_ptr.vmem [resolvable:$true] %s1443
      %1449 = dma.vmem_to_hbm [thread:$0]  %s1444, 256, %s17, [#allocation3], 128, 128, 8
    $region73: #{funicross.1} parent=1 // pred_fallthru
      _
    // Predicated region
    $region74: #{funicross.1} parent=1 // pred_check
      _
    $region75: #{funicross.1} parent=1 // pred_check_branch
      %1451 = sbr.rel (0) target = $region77
    $region76: #{funicross.1} parent=1 // pred_region
      %1452 = dma.done [#allocation3], 256
    $region77: #{funicross.1} parent=1 // pred_fallthru
      _
    %1453 = vsyncpa [#allocation3], 1

</llo_original>
